<compile_context>
chip_gen: v6e
topology: v6e:2x2x1
jax: 0.10.0
libtpu: 0.0.40
codegen_flags: <defaults>
</compile_context>

<pallas_src>
import functools

import jax
import jax.numpy as jnp
from jax.experimental import pallas as pl
from jax.experimental.pallas import tpu as pltpu

BN_EPS = 1e-5
LEAKY_SLOPE = 0.2   # matches nn.LeakyReLU(0.2) in the reference module


# ----------------------------------------------------------------------------
# Boundary layout glue (one tiny transpose in, one out; everything else fused)
# ----------------------------------------------------------------------------
def _to_zorder(x):
    """(B, 3, 32, 32) NCHW -> (16*B, 192).

    Rows ordered (h3, w3, b); cols ordered (a2, b2, a1, b1, a0, b0, c) where
    h = h3*8 + a2*4 + a1*2 + a0 and w = w3*8 + b2*4 + b1*2 + b0.
    """
    B = x.shape[0]
    t = x.reshape(B, 3, 4, 2, 2, 2, 4, 2, 2, 2)
    #              b  c h3 a2 a1 a0 w3 b2 b1 b0
    t = t.transpose(2, 6, 0, 3, 7, 4, 8, 5, 9, 1)
    return t.reshape(16 * B, 192)


def _from_zorder(y, B):
    """(16*B, 192) Z-order (same layout as above, 3 channels) -> (B, 3, 32, 32)."""
    t = y.reshape(4, 4, B, 2, 2, 2, 2, 2, 2, 3)
    #             h3 w3 b a2 b2 a1 b1 a0 b0  c
    t = t.transpose(2, 9, 0, 3, 5, 7, 1, 4, 6, 8)
    #               b  c h3 a2 a1 a0 w3 b2 b1 b0
    return t.reshape(B, 3, 32, 32)


# ----------------------------------------------------------------------------
# Single fused whole-model kernel
# ----------------------------------------------------------------------------
def _vae_kernel(x_ref, eps_ref,
                ew0_ref, es0_ref, ew1_ref, es1_ref, ew2_ref, es2_ref,
                wml_ref, bml_ref, wdf_ref, bdf_ref,
                dw0_ref, ds0_ref, dw1_ref, ds1_ref, dw2_ref, ds2_ref,
                out_ref, mean_ref, logvar_ref,
                flat_scr, grid_scr,
                *, latent_dim, batch, n_pos, n_feat):
    f32 = jnp.float32

    def mm(a, w_ref, s_ref):
        # BN scale already folded into w; only the shift is added here.
        return jnp.dot(a, w_ref[...], preferred_element_type=f32) + s_ref[...]

    def leaky(v):
        return jnp.where(v > 0, v, LEAKY_SLOPE * v)

    # ---- encoder: 3x (conv k=2 s=2 + folded BN + ReLU) as matmuls ----------
    h = x_ref[...]                                    # (n_pos*batch, 192)
    h = jnp.maximum(mm(h, ew0_ref, es0_ref), 0.0)     # (32, 128)
    h = jnp.maximum(mm(h, ew1_ref, es1_ref), 0.0)     # (32, 64)
    h = jnp.maximum(mm(h, ew2_ref, es2_ref), 0.0)     # (32, 32)

    # ---- flatten: rows (p, b), cols c  ->  (batch, n_pos * n_feat) ---------
    grid_scr[...] = h
    for p in range(n_pos):
        flat_scr[:, p * n_feat:(p + 1) * n_feat] = (
            grid_scr[p * batch:(p + 1) * batch, :])

    # ---- merged mu / logvar linear ------------------------------------------
    ml = mm(flat_scr[...], wml_ref, bml_ref)          # (batch, 2*latent)
    mean = ml[:, :latent_dim]
    logvar = ml[:, latent_dim:2 * latent_dim]
    mean_ref[...] = mean
    logvar_ref[...] = logvar

    # ---- reparametrization ---------------------------------------------------
    std = jnp.exp(0.5 * logvar)
    z = mean + eps_ref[...] * std                     # (batch, latent)

    # ---- defloat linear, then un-flatten back to (n_pos*batch, n_feat) ------
    flat_scr[...] = mm(z, wdf_ref, bdf_ref)           # (batch, 512)
    for p in range(n_pos):
        grid_scr[p * batch:(p + 1) * batch, :] = (
            flat_scr[:, p * n_feat:(p + 1) * n_feat])

    # ---- decoder: 3x (convT k=2 s=2 + folded BN + act) as matmuls -----------
    g = grid_scr[...]                                 # (32, 32)
    g = leaky(mm(g, dw0_ref, ds0_ref))                # (32, 64)
    g = leaky(mm(g, dw1_ref, ds1_ref))                # (32, 128)
    g = mm(g, dw2_ref, ds2_ref)                       # (32, 192)
    out_ref[...] = jax.nn.sigmoid(g)


# ----------------------------------------------------------------------------
# Parameters (deterministic, synthetic) with all layout/BN folding at init
# ----------------------------------------------------------------------------
def _bn_fold(gamma, beta, running_mean, running_var, bias):
    scale = gamma / jnp.sqrt(running_var + BN_EPS)
    shift = (bias - running_mean) * scale + beta
    return scale, shift


def init_params(latent_dim, key):
    ks = jax.random.split(key, 18)
    p = {}

    def normal(k, shape, s=0.1):
        return jax.random.normal(k, shape, jnp.float32) * s

    feat = 32 * 4 * 4  # 512

    # ---- encoder convs: block-diagonal, BN scale folded in -----------------
    # (c_out, c_in, #independent 2x2 sub-positions handled per row)
    enc_cfg = [(8, 3, 16), (16, 8, 4), (32, 16, 1)]
    for i, (co, ci, rep) in enumerate(enc_cfg):
        w = normal(ks[i], (co, ci, 2, 2))                   # torch Conv2d layout
        b = normal(ks[3 + i], (co,), 0.05)
        gamma = jnp.ones((co,), jnp.float32)
        beta = jnp.zeros((co,), jnp.float32)
        rm = jnp.zeros((co,), jnp.float32)
        rv = jnp.ones((co,), jnp.float32)
        scale, shift = _bn_fold(gamma, beta, rm, rv, b)
        # per-patch matrix: rows ordered (kh, kw, c_in), cols c_out
        a = (w * scale[:, None, None, None]).transpose(2, 3, 1, 0).reshape(4 * ci, co)
        p[f"enc{i}_w"] = jnp.kron(jnp.eye(rep, dtype=jnp.float32), a)
        p[f"enc{i}_s"] = jnp.tile(shift, rep).reshape(1, rep * co)

    # ---- merged mu / logvar linear (rows permuted torch (c,h,w)->(h,w,c)) --
    def perm_rows(w):  # (latent, 512 torch order) -> (512 z-order, latent)
        return (w.reshape(latent_dim, 32, 4, 4)
                 .transpose(2, 3, 1, 0).reshape(feat, latent_dim))

    w_mu = normal(ks[6], (latent_dim, feat))
    b_mu = normal(ks[7], (latent_dim,), 0.05)
    w_lv = normal(ks[8], (latent_dim, feat))
    b_lv = normal(ks[9], (latent_dim,), 0.05)
    p["wml"] = jnp.concatenate([perm_rows(w_mu), perm_rows(w_lv)], axis=1)  # (512, 2L)
    p["bml"] = jnp.concatenate([b_mu, b_lv]).reshape(1, 2 * latent_dim)

    # ---- defloat linear (output cols permuted torch (c,h,w)->(h,w,c)) ------
    w_df = normal(ks[10], (feat, latent_dim))
    b_df = normal(ks[11], (feat,), 0.05)
    w_df = (w_df.reshape(32, 4, 4, latent_dim)
                .transpose(1, 2, 0, 3).reshape(feat, latent_dim))
    p["wdf"] = w_df.T                                                       # (L, 512)
    p["bdf"] = b_df.reshape(32, 4, 4).transpose(1, 2, 0).reshape(1, feat)

    # ---- decoder conv-transposes: block-diagonal, BN scale folded in -------
    dec_cfg = [(32, 16, 1), (16, 8, 4), (8, 3, 16)]   # (c_in, c_out, rep)
    for i, (ci, co, rep) in enumerate(dec_cfg):
        w = normal(ks[12 + i], (ci, co, 2, 2))              # torch ConvT layout
        b = normal(ks[15 + i], (co,), 0.05)
        gamma = jnp.ones((co,), jnp.float32)
        beta = jnp.zeros((co,), jnp.float32)
        rm = jnp.zeros((co,), jnp.float32)
        rv = jnp.ones((co,), jnp.float32)
        scale, shift = _bn_fold(gamma, beta, rm, rv, b)
        # per-patch matrix: rows c_in, cols ordered (dh, dw, c_out)
        d = (w * scale[None, :, None, None]).transpose(0, 2, 3, 1).reshape(ci, 4 * co)
        p[f"dec{i}_w"] = jnp.kron(jnp.eye(rep, dtype=jnp.float32), d)
        p[f"dec{i}_s"] = jnp.tile(shift, 4 * rep).reshape(1, rep * 4 * co)
    return p


# ----------------------------------------------------------------------------
# Forward pass: one pallas_call
# ----------------------------------------------------------------------------
def vae_forward(params, x, eps_key, latent_dim):
    B = x.shape[0]
    assert x.shape[1:] == (3, 32, 32)
    n_pos, n_feat = 16, 32

    x_z = _to_zorder(x)                                       # (n_pos*B, 192)
    eps = jax.random.normal(eps_key, (B, latent_dim), jnp.float32)

    inputs = (
        x_z, eps,
        params["enc0_w"], params["enc0_s"],
        params["enc1_w"], params["enc1_s"],
        params["enc2_w"], params["enc2_s"],
        params["wml"], params["bml"], params["wdf"], params["bdf"],
        params["dec0_w"], params["dec0_s"],
        params["dec1_w"], params["dec1_s"],
        params["dec2_w"], params["dec2_s"],
    )
    out_shapes = (
        jax.ShapeDtypeStruct((n_pos * B, 192), jnp.float32),  # decoder out (Z-order)
        jax.ShapeDtypeStruct((B, latent_dim), jnp.float32),   # mean
        jax.ShapeDtypeStruct((B, latent_dim), jnp.float32),   # logvar
    )

    kernel = functools.partial(_vae_kernel, latent_dim=latent_dim, batch=B,
                               n_pos=n_pos, n_feat=n_feat)

    out_z, mean, logvar = pl.pallas_call(
        kernel,
        out_shape=out_shapes,
        grid=(1,),
        in_specs=[pl.BlockSpec(a.shape, lambda i: (0, 0)) for a in inputs],
        out_specs=tuple(pl.BlockSpec(s.shape, lambda i: (0, 0)) for s in out_shapes),
        scratch_shapes=[
            pltpu.VMEM((B, n_pos * n_feat), jnp.float32),     # flat_scr (B, 512)
            pltpu.VMEM((n_pos * B, n_feat), jnp.float32),     # grid_scr (32, 32)
        ],
        compiler_params=pltpu.CompilerParams(
            dimension_semantics=("arbitrary",)),
    )(*inputs)

    imp = _from_zorder(out_z, B)
    return imp, mean, logvar


# ----------------------------------------------------------------------------
if __name__ == "__main__":
    latent_dim = 32
    B = 2

    key = jax.random.PRNGKey(0)
    k_x, k_params, k_eps = jax.random.split(key, 3)

    # input consistent with the module: 3 stride-2 convs -> 4x4, so H=W=32
    x = jax.random.normal(k_x, (B, 3, 32, 32), jnp.float32)
    params = init_params(latent_dim, k_params)

    fwd = jax.jit(functools.partial(vae_forward, latent_dim=latent_dim))
    imp, mean, logvar = fwd(params, x, k_eps)
    jax.block_until_ready((imp, mean, logvar))

    assert imp.shape == (B, 3, 32, 32)
    assert mean.shape == (B, latent_dim)
    assert logvar.shape == (B, latent_dim)
    assert bool(jnp.all(jnp.isfinite(imp)))
    assert bool(jnp.all((imp >= 0.0) & (imp <= 1.0)))  # sigmoid output range

    print("KERNEL_OK")
</pallas_src>

<mosaic_0001>
module attributes {stable_mosaic.version = 11 : i64} {
  func.func @_vae_kernel(%arg0: i32, %arg1: memref<32x192xf32, #tpu.memory_space<vmem>>, %arg2: memref<2x32xf32, #tpu.memory_space<vmem>>, %arg3: memref<192x128xf32, #tpu.memory_space<vmem>>, %arg4: memref<1x128xf32, #tpu.memory_space<vmem>>, %arg5: memref<128x64xf32, #tpu.memory_space<vmem>>, %arg6: memref<1x64xf32, #tpu.memory_space<vmem>>, %arg7: memref<64x32xf32, #tpu.memory_space<vmem>>, %arg8: memref<1x32xf32, #tpu.memory_space<vmem>>, %arg9: memref<512x64xf32, #tpu.memory_space<vmem>>, %arg10: memref<1x64xf32, #tpu.memory_space<vmem>>, %arg11: memref<32x512xf32, #tpu.memory_space<vmem>>, %arg12: memref<1x512xf32, #tpu.memory_space<vmem>>, %arg13: memref<32x64xf32, #tpu.memory_space<vmem>>, %arg14: memref<1x64xf32, #tpu.memory_space<vmem>>, %arg15: memref<64x128xf32, #tpu.memory_space<vmem>>, %arg16: memref<1x128xf32, #tpu.memory_space<vmem>>, %arg17: memref<128x192xf32, #tpu.memory_space<vmem>>, %arg18: memref<1x192xf32, #tpu.memory_space<vmem>>, %arg19: memref<32x192xf32, #tpu.memory_space<vmem>>, %arg20: memref<2x32xf32, #tpu.memory_space<vmem>>, %arg21: memref<2x32xf32, #tpu.memory_space<vmem>>, %arg22: memref<2x512xf32, #tpu.memory_space<vmem>>, %arg23: memref<32x32xf32, #tpu.memory_space<vmem>>) attributes {dimension_semantics = [#tpu.dimension_semantics<arbitrary>], iteration_bounds = array<i64: 1>, scalar_prefetch = 0 : i64, scratch_operands = 2 : i64, tpu.core_type = #tpu.core_type<tc>, window_params = [{pipeline_mode = #tpu.pipeline_mode<synchronous>, transform_indices = @transform_0, window_bounds = array<i64: 32, 192>}, {pipeline_mode = #tpu.pipeline_mode<synchronous>, transform_indices = @transform_1, window_bounds = array<i64: 2, 32>}, {pipeline_mode = #tpu.pipeline_mode<synchronous>, transform_indices = @transform_2, window_bounds = array<i64: 192, 128>}, {pipeline_mode = #tpu.pipeline_mode<synchronous>, transform_indices = @transform_3, window_bounds = array<i64: 1, 128>}, {pipeline_mode = #tpu.pipeline_mode<synchronous>, transform_indices = @transform_4, window_bounds = array<i64: 128, 64>}, {pipeline_mode = #tpu.pipeline_mode<synchronous>, transform_indices = @transform_5, window_bounds = array<i64: 1, 64>}, {pipeline_mode = #tpu.pipeline_mode<synchronous>, transform_indices = @transform_6, window_bounds = array<i64: 64, 32>}, {pipeline_mode = #tpu.pipeline_mode<synchronous>, transform_indices = @transform_7, window_bounds = array<i64: 1, 32>}, {pipeline_mode = #tpu.pipeline_mode<synchronous>, transform_indices = @transform_8, window_bounds = array<i64: 512, 64>}, {pipeline_mode = #tpu.pipeline_mode<synchronous>, transform_indices = @transform_9, window_bounds = array<i64: 1, 64>}, {pipeline_mode = #tpu.pipeline_mode<synchronous>, transform_indices = @transform_10, window_bounds = array<i64: 32, 512>}, {pipeline_mode = #tpu.pipeline_mode<synchronous>, transform_indices = @transform_11, window_bounds = array<i64: 1, 512>}, {pipeline_mode = #tpu.pipeline_mode<synchronous>, transform_indices = @transform_12, window_bounds = array<i64: 32, 64>}, {pipeline_mode = #tpu.pipeline_mode<synchronous>, transform_indices = @transform_13, window_bounds = array<i64: 1, 64>}, {pipeline_mode = #tpu.pipeline_mode<synchronous>, transform_indices = @transform_14, window_bounds = array<i64: 64, 128>}, {pipeline_mode = #tpu.pipeline_mode<synchronous>, transform_indices = @transform_15, window_bounds = array<i64: 1, 128>}, {pipeline_mode = #tpu.pipeline_mode<synchronous>, transform_indices = @transform_16, window_bounds = array<i64: 128, 192>}, {pipeline_mode = #tpu.pipeline_mode<synchronous>, transform_indices = @transform_17, window_bounds = array<i64: 1, 192>}, {pipeline_mode = #tpu.pipeline_mode<synchronous>, transform_indices = @transform_18, window_bounds = array<i64: 32, 192>}, {pipeline_mode = #tpu.pipeline_mode<synchronous>, transform_indices = @transform_19, window_bounds = array<i64: 2, 32>}, {pipeline_mode = #tpu.pipeline_mode<synchronous>, transform_indices = @transform_20, window_bounds = array<i64: 2, 32>}]} {
    %c0 = arith.constant 0 : index
    %c0_0 = arith.constant 0 : index
    %0 = vector.load %arg1[%c0, %c0_0] : memref<32x192xf32, #tpu.memory_space<vmem>>, vector<32x192xf32>
    %c0_1 = arith.constant 0 : index
    %c0_2 = arith.constant 0 : index
    %1 = vector.load %arg3[%c0_1, %c0_2] : memref<192x128xf32, #tpu.memory_space<vmem>>, vector<192x128xf32>
    %cst = arith.constant dense<0.000000e+00> : vector<32x128xf32>
    %2 = tpu.matmul %0, %1, %cst {dimension_numbers = #tpu.dot_dimension_numbers<[1], [0], [0], [1], [0, 0, 1, 1], [], []>} : vector<32x192xf32>, vector<192x128xf32>, vector<32x128xf32> -> vector<32x128xf32>
    %c0_3 = arith.constant 0 : index
    %c0_4 = arith.constant 0 : index
    %3 = vector.load %arg4[%c0_3, %c0_4] : memref<1x128xf32, #tpu.memory_space<vmem>>, vector<1x128xf32>
    %4 = vector.broadcast %3 : vector<1x128xf32> to vector<32x128xf32>
    %5 = arith.addf %2, %4 : vector<32x128xf32>
    %cst_5 = arith.constant 0.000000e+00 : f32
    %6 = vector.broadcast %cst_5 : f32 to vector<32x128xf32>
    %7 = arith.maximumf %5, %6 : vector<32x128xf32>
    %c0_6 = arith.constant 0 : index
    %c0_7 = arith.constant 0 : index
    %8 = vector.load %arg5[%c0_6, %c0_7] : memref<128x64xf32, #tpu.memory_space<vmem>>, vector<128x64xf32>
    %cst_8 = arith.constant dense<0.000000e+00> : vector<32x64xf32>
    %9 = tpu.matmul %7, %8, %cst_8 {dimension_numbers = #tpu.dot_dimension_numbers<[1], [0], [0], [1], [0, 0, 1, 1], [], []>} : vector<32x128xf32>, vector<128x64xf32>, vector<32x64xf32> -> vector<32x64xf32>
    %c0_9 = arith.constant 0 : index
    %c0_10 = arith.constant 0 : index
    %10 = vector.load %arg6[%c0_9, %c0_10] : memref<1x64xf32, #tpu.memory_space<vmem>>, vector<1x64xf32>
    %11 = vector.broadcast %10 : vector<1x64xf32> to vector<32x64xf32>
    %12 = arith.addf %9, %11 : vector<32x64xf32>
    %cst_11 = arith.constant 0.000000e+00 : f32
    %13 = vector.broadcast %cst_11 : f32 to vector<32x64xf32>
    %14 = arith.maximumf %12, %13 : vector<32x64xf32>
    %c0_12 = arith.constant 0 : index
    %c0_13 = arith.constant 0 : index
    %15 = vector.load %arg7[%c0_12, %c0_13] : memref<64x32xf32, #tpu.memory_space<vmem>>, vector<64x32xf32>
    %cst_14 = arith.constant dense<0.000000e+00> : vector<32x32xf32>
    %16 = tpu.matmul %14, %15, %cst_14 {dimension_numbers = #tpu.dot_dimension_numbers<[1], [0], [0], [1], [0, 0, 1, 1], [], []>} : vector<32x64xf32>, vector<64x32xf32>, vector<32x32xf32> -> vector<32x32xf32>
    %c0_15 = arith.constant 0 : index
    %c0_16 = arith.constant 0 : index
    %17 = vector.load %arg8[%c0_15, %c0_16] : memref<1x32xf32, #tpu.memory_space<vmem>>, vector<1x32xf32>
    %18 = vector.broadcast %17 : vector<1x32xf32> to vector<32x32xf32>
    %19 = arith.addf %16, %18 : vector<32x32xf32>
    %cst_17 = arith.constant 0.000000e+00 : f32
    %20 = vector.broadcast %cst_17 : f32 to vector<32x32xf32>
    %21 = arith.maximumf %19, %20 : vector<32x32xf32>
    %c0_18 = arith.constant 0 : index
    %c0_19 = arith.constant 0 : index
    %22 = vector.load %arg23[%c0_18, %c0_19] : memref<32x32xf32, #tpu.memory_space<vmem>>, vector<32x32xf32>
    tpu.vector_store %arg23[%c0_18, %c0_19], %21 {strides = array<i32>} : memref<32x32xf32, #tpu.memory_space<vmem>>, vector<32x32xf32>,
    %c0_20 = arith.constant 0 : index
    %c0_21 = arith.constant 0 : index
    %23 = vector.load %arg23[%c0_20, %c0_21] : memref<32x32xf32, #tpu.memory_space<vmem>>, vector<2x32xf32>
    %c0_22 = arith.constant 0 : index
    %c0_23 = arith.constant 0 : index
    %24 = vector.load %arg22[%c0_22, %c0_23] : memref<2x512xf32, #tpu.memory_space<vmem>>, vector<2x32xf32>
    tpu.vector_store %arg22[%c0_22, %c0_23], %23 {strides = array<i32>} : memref<2x512xf32, #tpu.memory_space<vmem>>, vector<2x32xf32>,
    %c2 = arith.constant 2 : index
    %c0_24 = arith.constant 0 : index
    %25 = vector.load %arg23[%c2, %c0_24] : memref<32x32xf32, #tpu.memory_space<vmem>>, vector<2x32xf32>
    %c0_25 = arith.constant 0 : index
    %c32 = arith.constant 32 : index
    %26 = vector.load %arg22[%c0_25, %c32] : memref<2x512xf32, #tpu.memory_space<vmem>>, vector<2x32xf32>
    tpu.vector_store %arg22[%c0_25, %c32], %25 {strides = array<i32>} : memref<2x512xf32, #tpu.memory_space<vmem>>, vector<2x32xf32>,
    %c4 = arith.constant 4 : index
    %c0_26 = arith.constant 0 : index
    %27 = vector.load %arg23[%c4, %c0_26] : memref<32x32xf32, #tpu.memory_space<vmem>>, vector<2x32xf32>
    %c0_27 = arith.constant 0 : index
    %c64 = arith.constant 64 : index
    %28 = vector.load %arg22[%c0_27, %c64] : memref<2x512xf32, #tpu.memory_space<vmem>>, vector<2x32xf32>
    tpu.vector_store %arg22[%c0_27, %c64], %27 {strides = array<i32>} : memref<2x512xf32, #tpu.memory_space<vmem>>, vector<2x32xf32>,
    %c6 = arith.constant 6 : index
    %c0_28 = arith.constant 0 : index
    %29 = vector.load %arg23[%c6, %c0_28] : memref<32x32xf32, #tpu.memory_space<vmem>>, vector<2x32xf32>
    %c0_29 = arith.constant 0 : index
    %c96 = arith.constant 96 : index
    %30 = vector.load %arg22[%c0_29, %c96] : memref<2x512xf32, #tpu.memory_space<vmem>>, vector<2x32xf32>
    tpu.vector_store %arg22[%c0_29, %c96], %29 {strides = array<i32>} : memref<2x512xf32, #tpu.memory_space<vmem>>, vector<2x32xf32>,
    %c8 = arith.constant 8 : index
    %c0_30 = arith.constant 0 : index
    %31 = vector.load %arg23[%c8, %c0_30] : memref<32x32xf32, #tpu.memory_space<vmem>>, vector<2x32xf32>
    %c0_31 = arith.constant 0 : index
    %c128 = arith.constant 128 : index
    %32 = vector.load %arg22[%c0_31, %c128] : memref<2x512xf32, #tpu.memory_space<vmem>>, vector<2x32xf32>
    tpu.vector_store %arg22[%c0_31, %c128], %31 {strides = array<i32>} : memref<2x512xf32, #tpu.memory_space<vmem>>, vector<2x32xf32>,
    %c10 = arith.constant 10 : index
    %c0_32 = arith.constant 0 : index
    %33 = vector.load %arg23[%c10, %c0_32] : memref<32x32xf32, #tpu.memory_space<vmem>>, vector<2x32xf32>
    %c0_33 = arith.constant 0 : index
    %c160 = arith.constant 160 : index
    %34 = vector.load %arg22[%c0_33, %c160] : memref<2x512xf32, #tpu.memory_space<vmem>>, vector<2x32xf32>
    tpu.vector_store %arg22[%c0_33, %c160], %33 {strides = array<i32>} : memref<2x512xf32, #tpu.memory_space<vmem>>, vector<2x32xf32>,
    %c12 = arith.constant 12 : index
    %c0_34 = arith.constant 0 : index
    %35 = vector.load %arg23[%c12, %c0_34] : memref<32x32xf32, #tpu.memory_space<vmem>>, vector<2x32xf32>
    %c0_35 = arith.constant 0 : index
    %c192 = arith.constant 192 : index
    %36 = vector.load %arg22[%c0_35, %c192] : memref<2x512xf32, #tpu.memory_space<vmem>>, vector<2x32xf32>
    tpu.vector_store %arg22[%c0_35, %c192], %35 {strides = array<i32>} : memref<2x512xf32, #tpu.memory_space<vmem>>, vector<2x32xf32>,
    %c14 = arith.constant 14 : index
    %c0_36 = arith.constant 0 : index
    %37 = vector.load %arg23[%c14, %c0_36] : memref<32x32xf32, #tpu.memory_space<vmem>>, vector<2x32xf32>
    %c0_37 = arith.constant 0 : index
    %c224 = arith.constant 224 : index
    %38 = vector.load %arg22[%c0_37, %c224] : memref<2x512xf32, #tpu.memory_space<vmem>>, vector<2x32xf32>
    tpu.vector_store %arg22[%c0_37, %c224], %37 {strides = array<i32>} : memref<2x512xf32, #tpu.memory_space<vmem>>, vector<2x32xf32>,
    %c16 = arith.constant 16 : index
    %c0_38 = arith.constant 0 : index
    %39 = vector.load %arg23[%c16, %c0_38] : memref<32x32xf32, #tpu.memory_space<vmem>>, vector<2x32xf32>
    %c0_39 = arith.constant 0 : index
    %c256 = arith.constant 256 : index
    %40 = vector.load %arg22[%c0_39, %c256] : memref<2x512xf32, #tpu.memory_space<vmem>>, vector<2x32xf32>
    tpu.vector_store %arg22[%c0_39, %c256], %39 {strides = array<i32>} : memref<2x512xf32, #tpu.memory_space<vmem>>, vector<2x32xf32>,
    %c18 = arith.constant 18 : index
    %c0_40 = arith.constant 0 : index
    %41 = vector.load %arg23[%c18, %c0_40] : memref<32x32xf32, #tpu.memory_space<vmem>>, vector<2x32xf32>
    %c0_41 = arith.constant 0 : index
    %c288 = arith.constant 288 : index
    %42 = vector.load %arg22[%c0_41, %c288] : memref<2x512xf32, #tpu.memory_space<vmem>>, vector<2x32xf32>
    tpu.vector_store %arg22[%c0_41, %c288], %41 {strides = array<i32>} : memref<2x512xf32, #tpu.memory_space<vmem>>, vector<2x32xf32>,
    %c20 = arith.constant 20 : index
    %c0_42 = arith.constant 0 : index
    %43 = vector.load %arg23[%c20, %c0_42] : memref<32x32xf32, #tpu.memory_space<vmem>>, vector<2x32xf32>
    %c0_43 = arith.constant 0 : index
    %c320 = arith.constant 320 : index
    %44 = vector.load %arg22[%c0_43, %c320] : memref<2x512xf32, #tpu.memory_space<vmem>>, vector<2x32xf32>
    tpu.vector_store %arg22[%c0_43, %c320], %43 {strides = array<i32>} : memref<2x512xf32, #tpu.memory_space<vmem>>, vector<2x32xf32>,
    %c22 = arith.constant 22 : index
    %c0_44 = arith.constant 0 : index
    %45 = vector.load %arg23[%c22, %c0_44] : memref<32x32xf32, #tpu.memory_space<vmem>>, vector<2x32xf32>
    %c0_45 = arith.constant 0 : index
    %c352 = arith.constant 352 : index
    %46 = vector.load %arg22[%c0_45, %c352] : memref<2x512xf32, #tpu.memory_space<vmem>>, vector<2x32xf32>
    tpu.vector_store %arg22[%c0_45, %c352], %45 {strides = array<i32>} : memref<2x512xf32, #tpu.memory_space<vmem>>, vector<2x32xf32>,
    %c24 = arith.constant 24 : index
    %c0_46 = arith.constant 0 : index
    %47 = vector.load %arg23[%c24, %c0_46] : memref<32x32xf32, #tpu.memory_space<vmem>>, vector<2x32xf32>
    %c0_47 = arith.constant 0 : index
    %c384 = arith.constant 384 : index
    %48 = vector.load %arg22[%c0_47, %c384] : memref<2x512xf32, #tpu.memory_space<vmem>>, vector<2x32xf32>
    tpu.vector_store %arg22[%c0_47, %c384], %47 {strides = array<i32>} : memref<2x512xf32, #tpu.memory_space<vmem>>, vector<2x32xf32>,
    %c26 = arith.constant 26 : index
    %c0_48 = arith.constant 0 : index
    %49 = vector.load %arg23[%c26, %c0_48] : memref<32x32xf32, #tpu.memory_space<vmem>>, vector<2x32xf32>
    %c0_49 = arith.constant 0 : index
    %c416 = arith.constant 416 : index
    %50 = vector.load %arg22[%c0_49, %c416] : memref<2x512xf32, #tpu.memory_space<vmem>>, vector<2x32xf32>
    tpu.vector_store %arg22[%c0_49, %c416], %49 {strides = array<i32>} : memref<2x512xf32, #tpu.memory_space<vmem>>, vector<2x32xf32>,
    %c28 = arith.constant 28 : index
    %c0_50 = arith.constant 0 : index
    %51 = vector.load %arg23[%c28, %c0_50] : memref<32x32xf32, #tpu.memory_space<vmem>>, vector<2x32xf32>
    %c0_51 = arith.constant 0 : index
    %c448 = arith.constant 448 : index
    %52 = vector.load %arg22[%c0_51, %c448] : memref<2x512xf32, #tpu.memory_space<vmem>>, vector<2x32xf32>
    tpu.vector_store %arg22[%c0_51, %c448], %51 {strides = array<i32>} : memref<2x512xf32, #tpu.memory_space<vmem>>, vector<2x32xf32>,
    %c30 = arith.constant 30 : index
    %c0_52 = arith.constant 0 : index
    %53 = vector.load %arg23[%c30, %c0_52] : memref<32x32xf32, #tpu.memory_space<vmem>>, vector<2x32xf32>
    %c0_53 = arith.constant 0 : index
    %c480 = arith.constant 480 : index
    %54 = vector.load %arg22[%c0_53, %c480] : memref<2x512xf32, #tpu.memory_space<vmem>>, vector<2x32xf32>
    tpu.vector_store %arg22[%c0_53, %c480], %53 {strides = array<i32>} : memref<2x512xf32, #tpu.memory_space<vmem>>, vector<2x32xf32>,
    %c0_54 = arith.constant 0 : index
    %c0_55 = arith.constant 0 : index
    %55 = vector.load %arg22[%c0_54, %c0_55] : memref<2x512xf32, #tpu.memory_space<vmem>>, vector<2x512xf32>
    %c0_56 = arith.constant 0 : index
    %c0_57 = arith.constant 0 : index
    %56 = vector.load %arg9[%c0_56, %c0_57] : memref<512x64xf32, #tpu.memory_space<vmem>>, vector<512x64xf32>
    %cst_58 = arith.constant dense<0.000000e+00> : vector<2x64xf32>
    %57 = tpu.matmul %55, %56, %cst_58 {dimension_numbers = #tpu.dot_dimension_numbers<[1], [0], [0], [1], [0, 0, 1, 1], [], []>} : vector<2x512xf32>, vector<512x64xf32>, vector<2x64xf32> -> vector<2x64xf32>
    %c0_59 = arith.constant 0 : index
    %c0_60 = arith.constant 0 : index
    %58 = vector.load %arg10[%c0_59, %c0_60] : memref<1x64xf32, #tpu.memory_space<vmem>>, vector<1x64xf32>
    %59 = vector.broadcast %58 : vector<1x64xf32> to vector<2x64xf32>
    %60 = arith.addf %57, %59 : vector<2x64xf32>
    %61 = vector.extract_strided_slice %60 {offsets = [0, 0], sizes = [2, 32], strides = [1, 1]} : vector<2x64xf32> to vector<2x32xf32>
    %62 = vector.extract_strided_slice %60 {offsets = [0, 32], sizes = [2, 32], strides = [1, 1]} : vector<2x64xf32> to vector<2x32xf32>
    %c0_61 = arith.constant 0 : index
    %c0_62 = arith.constant 0 : index
    %63 = vector.load %arg20[%c0_61, %c0_62] : memref<2x32xf32, #tpu.memory_space<vmem>>, vector<2x32xf32>
    tpu.vector_store %arg20[%c0_61, %c0_62], %61 {strides = array<i32>} : memref<2x32xf32, #tpu.memory_space<vmem>>, vector<2x32xf32>,
    %c0_63 = arith.constant 0 : index
    %c0_64 = arith.constant 0 : index
    %64 = vector.load %arg21[%c0_63, %c0_64] : memref<2x32xf32, #tpu.memory_space<vmem>>, vector<2x32xf32>
    tpu.vector_store %arg21[%c0_63, %c0_64], %62 {strides = array<i32>} : memref<2x32xf32, #tpu.memory_space<vmem>>, vector<2x32xf32>,
    %cst_65 = arith.constant 5.000000e-01 : f32
    %65 = vector.broadcast %cst_65 : f32 to vector<2x32xf32>
    %66 = arith.mulf %65, %62 : vector<2x32xf32>
    %67 = math.exp %66 : vector<2x32xf32>
    %c0_66 = arith.constant 0 : index
    %c0_67 = arith.constant 0 : index
    %68 = vector.load %arg2[%c0_66, %c0_67] : memref<2x32xf32, #tpu.memory_space<vmem>>, vector<2x32xf32>
    %69 = arith.mulf %68, %67 : vector<2x32xf32>
    %70 = arith.addf %61, %69 : vector<2x32xf32>
    %c0_68 = arith.constant 0 : index
    %c0_69 = arith.constant 0 : index
    %71 = vector.load %arg11[%c0_68, %c0_69] : memref<32x512xf32, #tpu.memory_space<vmem>>, vector<32x512xf32>
    %cst_70 = arith.constant dense<0.000000e+00> : vector<2x512xf32>
    %72 = tpu.matmul %70, %71, %cst_70 {dimension_numbers = #tpu.dot_dimension_numbers<[1], [0], [0], [1], [0, 0, 1, 1], [], []>} : vector<2x32xf32>, vector<32x512xf32>, vector<2x512xf32> -> vector<2x512xf32>
    %c0_71 = arith.constant 0 : index
    %c0_72 = arith.constant 0 : index
    %73 = vector.load %arg12[%c0_71, %c0_72] : memref<1x512xf32, #tpu.memory_space<vmem>>, vector<1x512xf32>
    %74 = vector.broadcast %73 : vector<1x512xf32> to vector<2x512xf32>
    %75 = arith.addf %72, %74 : vector<2x512xf32>
    %c0_73 = arith.constant 0 : index
    %c0_74 = arith.constant 0 : index
    %76 = vector.load %arg22[%c0_73, %c0_74] : memref<2x512xf32, #tpu.memory_space<vmem>>, vector<2x512xf32>
    tpu.vector_store %arg22[%c0_73, %c0_74], %75 {strides = array<i32>} : memref<2x512xf32, #tpu.memory_space<vmem>>, vector<2x512xf32>,
    %c0_75 = arith.constant 0 : index
    %c0_76 = arith.constant 0 : index
    %77 = vector.load %arg22[%c0_75, %c0_76] : memref<2x512xf32, #tpu.memory_space<vmem>>, vector<2x32xf32>
    %c0_77 = arith.constant 0 : index
    %c0_78 = arith.constant 0 : index
    %78 = vector.load %arg23[%c0_77, %c0_78] : memref<32x32xf32, #tpu.memory_space<vmem>>, vector<2x32xf32>
    tpu.vector_store %arg23[%c0_77, %c0_78], %77 {strides = array<i32>} : memref<32x32xf32, #tpu.memory_space<vmem>>, vector<2x32xf32>,
    %c0_79 = arith.constant 0 : index
    %c32_80 = arith.constant 32 : index
    %79 = vector.load %arg22[%c0_79, %c32_80] : memref<2x512xf32, #tpu.memory_space<vmem>>, vector<2x32xf32>
    %c2_81 = arith.constant 2 : index
    %c0_82 = arith.constant 0 : index
    %80 = vector.load %arg23[%c2_81, %c0_82] : memref<32x32xf32, #tpu.memory_space<vmem>>, vector<2x32xf32>
    tpu.vector_store %arg23[%c2_81, %c0_82], %79 {strides = array<i32>} : memref<32x32xf32, #tpu.memory_space<vmem>>, vector<2x32xf32>,
    %c0_83 = arith.constant 0 : index
    %c64_84 = arith.constant 64 : index
    %81 = vector.load %arg22[%c0_83, %c64_84] : memref<2x512xf32, #tpu.memory_space<vmem>>, vector<2x32xf32>
    %c4_85 = arith.constant 4 : index
    %c0_86 = arith.constant 0 : index
    %82 = vector.load %arg23[%c4_85, %c0_86] : memref<32x32xf32, #tpu.memory_space<vmem>>, vector<2x32xf32>
    tpu.vector_store %arg23[%c4_85, %c0_86], %81 {strides = array<i32>} : memref<32x32xf32, #tpu.memory_space<vmem>>, vector<2x32xf32>,
    %c0_87 = arith.constant 0 : index
    %c96_88 = arith.constant 96 : index
    %83 = vector.load %arg22[%c0_87, %c96_88] : memref<2x512xf32, #tpu.memory_space<vmem>>, vector<2x32xf32>
    %c6_89 = arith.constant 6 : index
    %c0_90 = arith.constant 0 : index
    %84 = vector.load %arg23[%c6_89, %c0_90] : memref<32x32xf32, #tpu.memory_space<vmem>>, vector<2x32xf32>
    tpu.vector_store %arg23[%c6_89, %c0_90], %83 {strides = array<i32>} : memref<32x32xf32, #tpu.memory_space<vmem>>, vector<2x32xf32>,
    %c0_91 = arith.constant 0 : index
    %c128_92 = arith.constant 128 : index
    %85 = vector.load %arg22[%c0_91, %c128_92] : memref<2x512xf32, #tpu.memory_space<vmem>>, vector<2x32xf32>
    %c8_93 = arith.constant 8 : index
    %c0_94 = arith.constant 0 : index
    %86 = vector.load %arg23[%c8_93, %c0_94] : memref<32x32xf32, #tpu.memory_space<vmem>>, vector<2x32xf32>
    tpu.vector_store %arg23[%c8_93, %c0_94], %85 {strides = array<i32>} : memref<32x32xf32, #tpu.memory_space<vmem>>, vector<2x32xf32>,
    %c0_95 = arith.constant 0 : index
    %c160_96 = arith.constant 160 : index
    %87 = vector.load %arg22[%c0_95, %c160_96] : memref<2x512xf32, #tpu.memory_space<vmem>>, vector<2x32xf32>
    %c10_97 = arith.constant 10 : index
    %c0_98 = arith.constant 0 : index
    %88 = vector.load %arg23[%c10_97, %c0_98] : memref<32x32xf32, #tpu.memory_space<vmem>>, vector<2x32xf32>
    tpu.vector_store %arg23[%c10_97, %c0_98], %87 {strides = array<i32>} : memref<32x32xf32, #tpu.memory_space<vmem>>, vector<2x32xf32>,
    %c0_99 = arith.constant 0 : index
    %c192_100 = arith.constant 192 : index
    %89 = vector.load %arg22[%c0_99, %c192_100] : memref<2x512xf32, #tpu.memory_space<vmem>>, vector<2x32xf32>
    %c12_101 = arith.constant 12 : index
    %c0_102 = arith.constant 0 : index
    %90 = vector.load %arg23[%c12_101, %c0_102] : memref<32x32xf32, #tpu.memory_space<vmem>>, vector<2x32xf32>
    tpu.vector_store %arg23[%c12_101, %c0_102], %89 {strides = array<i32>} : memref<32x32xf32, #tpu.memory_space<vmem>>, vector<2x32xf32>,
    %c0_103 = arith.constant 0 : index
    %c224_104 = arith.constant 224 : index
    %91 = vector.load %arg22[%c0_103, %c224_104] : memref<2x512xf32, #tpu.memory_space<vmem>>, vector<2x32xf32>
    %c14_105 = arith.constant 14 : index
    %c0_106 = arith.constant 0 : index
    %92 = vector.load %arg23[%c14_105, %c0_106] : memref<32x32xf32, #tpu.memory_space<vmem>>, vector<2x32xf32>
    tpu.vector_store %arg23[%c14_105, %c0_106], %91 {strides = array<i32>} : memref<32x32xf32, #tpu.memory_space<vmem>>, vector<2x32xf32>,
    %c0_107 = arith.constant 0 : index
    %c256_108 = arith.constant 256 : index
    %93 = vector.load %arg22[%c0_107, %c256_108] : memref<2x512xf32, #tpu.memory_space<vmem>>, vector<2x32xf32>
    %c16_109 = arith.constant 16 : index
    %c0_110 = arith.constant 0 : index
    %94 = vector.load %arg23[%c16_109, %c0_110] : memref<32x32xf32, #tpu.memory_space<vmem>>, vector<2x32xf32>
    tpu.vector_store %arg23[%c16_109, %c0_110], %93 {strides = array<i32>} : memref<32x32xf32, #tpu.memory_space<vmem>>, vector<2x32xf32>,
    %c0_111 = arith.constant 0 : index
    %c288_112 = arith.constant 288 : index
    %95 = vector.load %arg22[%c0_111, %c288_112] : memref<2x512xf32, #tpu.memory_space<vmem>>, vector<2x32xf32>
    %c18_113 = arith.constant 18 : index
    %c0_114 = arith.constant 0 : index
    %96 = vector.load %arg23[%c18_113, %c0_114] : memref<32x32xf32, #tpu.memory_space<vmem>>, vector<2x32xf32>
    tpu.vector_store %arg23[%c18_113, %c0_114], %95 {strides = array<i32>} : memref<32x32xf32, #tpu.memory_space<vmem>>, vector<2x32xf32>,
    %c0_115 = arith.constant 0 : index
    %c320_116 = arith.constant 320 : index
    %97 = vector.load %arg22[%c0_115, %c320_116] : memref<2x512xf32, #tpu.memory_space<vmem>>, vector<2x32xf32>
    %c20_117 = arith.constant 20 : index
    %c0_118 = arith.constant 0 : index
    %98 = vector.load %arg23[%c20_117, %c0_118] : memref<32x32xf32, #tpu.memory_space<vmem>>, vector<2x32xf32>
    tpu.vector_store %arg23[%c20_117, %c0_118], %97 {strides = array<i32>} : memref<32x32xf32, #tpu.memory_space<vmem>>, vector<2x32xf32>,
    %c0_119 = arith.constant 0 : index
    %c352_120 = arith.constant 352 : index
    %99 = vector.load %arg22[%c0_119, %c352_120] : memref<2x512xf32, #tpu.memory_space<vmem>>, vector<2x32xf32>
    %c22_121 = arith.constant 22 : index
    %c0_122 = arith.constant 0 : index
    %100 = vector.load %arg23[%c22_121, %c0_122] : memref<32x32xf32, #tpu.memory_space<vmem>>, vector<2x32xf32>
    tpu.vector_store %arg23[%c22_121, %c0_122], %99 {strides = array<i32>} : memref<32x32xf32, #tpu.memory_space<vmem>>, vector<2x32xf32>,
    %c0_123 = arith.constant 0 : index
    %c384_124 = arith.constant 384 : index
    %101 = vector.load %arg22[%c0_123, %c384_124] : memref<2x512xf32, #tpu.memory_space<vmem>>, vector<2x32xf32>
    %c24_125 = arith.constant 24 : index
    %c0_126 = arith.constant 0 : index
    %102 = vector.load %arg23[%c24_125, %c0_126] : memref<32x32xf32, #tpu.memory_space<vmem>>, vector<2x32xf32>
    tpu.vector_store %arg23[%c24_125, %c0_126], %101 {strides = array<i32>} : memref<32x32xf32, #tpu.memory_space<vmem>>, vector<2x32xf32>,
    %c0_127 = arith.constant 0 : index
    %c416_128 = arith.constant 416 : index
    %103 = vector.load %arg22[%c0_127, %c416_128] : memref<2x512xf32, #tpu.memory_space<vmem>>, vector<2x32xf32>
    %c26_129 = arith.constant 26 : index
    %c0_130 = arith.constant 0 : index
    %104 = vector.load %arg23[%c26_129, %c0_130] : memref<32x32xf32, #tpu.memory_space<vmem>>, vector<2x32xf32>
    tpu.vector_store %arg23[%c26_129, %c0_130], %103 {strides = array<i32>} : memref<32x32xf32, #tpu.memory_space<vmem>>, vector<2x32xf32>,
    %c0_131 = arith.constant 0 : index
    %c448_132 = arith.constant 448 : index
    %105 = vector.load %arg22[%c0_131, %c448_132] : memref<2x512xf32, #tpu.memory_space<vmem>>, vector<2x32xf32>
    %c28_133 = arith.constant 28 : index
    %c0_134 = arith.constant 0 : index
    %106 = vector.load %arg23[%c28_133, %c0_134] : memref<32x32xf32, #tpu.memory_space<vmem>>, vector<2x32xf32>
    tpu.vector_store %arg23[%c28_133, %c0_134], %105 {strides = array<i32>} : memref<32x32xf32, #tpu.memory_space<vmem>>, vector<2x32xf32>,
    %c0_135 = arith.constant 0 : index
    %c480_136 = arith.constant 480 : index
    %107 = vector.load %arg22[%c0_135, %c480_136] : memref<2x512xf32, #tpu.memory_space<vmem>>, vector<2x32xf32>
    %c30_137 = arith.constant 30 : index
    %c0_138 = arith.constant 0 : index
    %108 = vector.load %arg23[%c30_137, %c0_138] : memref<32x32xf32, #tpu.memory_space<vmem>>, vector<2x32xf32>
    tpu.vector_store %arg23[%c30_137, %c0_138], %107 {strides = array<i32>} : memref<32x32xf32, #tpu.memory_space<vmem>>, vector<2x32xf32>,
    %c0_139 = arith.constant 0 : index
    %c0_140 = arith.constant 0 : index
    %109 = vector.load %arg23[%c0_139, %c0_140] : memref<32x32xf32, #tpu.memory_space<vmem>>, vector<32x32xf32>
    %c0_141 = arith.constant 0 : index
    %c0_142 = arith.constant 0 : index
    %110 = vector.load %arg13[%c0_141, %c0_142] : memref<32x64xf32, #tpu.memory_space<vmem>>, vector<32x64xf32>
    %cst_143 = arith.constant dense<0.000000e+00> : vector<32x64xf32>
    %111 = tpu.matmul %109, %110, %cst_143 {dimension_numbers = #tpu.dot_dimension_numbers<[1], [0], [0], [1], [0, 0, 1, 1], [], []>} : vector<32x32xf32>, vector<32x64xf32>, vector<32x64xf32> -> vector<32x64xf32>
    %c0_144 = arith.constant 0 : index
    %c0_145 = arith.constant 0 : index
    %112 = vector.load %arg14[%c0_144, %c0_145] : memref<1x64xf32, #tpu.memory_space<vmem>>, vector<1x64xf32>
    %113 = vector.broadcast %112 : vector<1x64xf32> to vector<32x64xf32>
    %114 = arith.addf %111, %113 : vector<32x64xf32>
    %cst_146 = arith.constant 0.000000e+00 : f32
    %115 = vector.broadcast %cst_146 : f32 to vector<32x64xf32>
    %116 = arith.cmpf ogt, %114, %115 : vector<32x64xf32>
    %cst_147 = arith.constant 2.000000e-01 : f32
    %117 = vector.broadcast %cst_147 : f32 to vector<32x64xf32>
    %118 = arith.mulf %117, %114 : vector<32x64xf32>
    %119 = arith.select %116, %114, %118 : vector<32x64xi1>, vector<32x64xf32>
    %c0_148 = arith.constant 0 : index
    %c0_149 = arith.constant 0 : index
    %120 = vector.load %arg15[%c0_148, %c0_149] : memref<64x128xf32, #tpu.memory_space<vmem>>, vector<64x128xf32>
    %cst_150 = arith.constant dense<0.000000e+00> : vector<32x128xf32>
    %121 = tpu.matmul %119, %120, %cst_150 {dimension_numbers = #tpu.dot_dimension_numbers<[1], [0], [0], [1], [0, 0, 1, 1], [], []>} : vector<32x64xf32>, vector<64x128xf32>, vector<32x128xf32> -> vector<32x128xf32>
    %c0_151 = arith.constant 0 : index
    %c0_152 = arith.constant 0 : index
    %122 = vector.load %arg16[%c0_151, %c0_152] : memref<1x128xf32, #tpu.memory_space<vmem>>, vector<1x128xf32>
    %123 = vector.broadcast %122 : vector<1x128xf32> to vector<32x128xf32>
    %124 = arith.addf %121, %123 : vector<32x128xf32>
    %cst_153 = arith.constant 0.000000e+00 : f32
    %125 = vector.broadcast %cst_153 : f32 to vector<32x128xf32>
    %126 = arith.cmpf ogt, %124, %125 : vector<32x128xf32>
    %cst_154 = arith.constant 2.000000e-01 : f32
    %127 = vector.broadcast %cst_154 : f32 to vector<32x128xf32>
    %128 = arith.mulf %127, %124 : vector<32x128xf32>
    %129 = arith.select %126, %124, %128 : vector<32x128xi1>, vector<32x128xf32>
    %c0_155 = arith.constant 0 : index
    %c0_156 = arith.constant 0 : index
    %130 = vector.load %arg17[%c0_155, %c0_156] : memref<128x192xf32, #tpu.memory_space<vmem>>, vector<128x192xf32>
    %cst_157 = arith.constant dense<0.000000e+00> : vector<32x192xf32>
    %131 = tpu.matmul %129, %130, %cst_157 {dimension_numbers = #tpu.dot_dimension_numbers<[1], [0], [0], [1], [0, 0, 1, 1], [], []>} : vector<32x128xf32>, vector<128x192xf32>, vector<32x192xf32> -> vector<32x192xf32>
    %c0_158 = arith.constant 0 : index
    %c0_159 = arith.constant 0 : index
    %132 = vector.load %arg18[%c0_158, %c0_159] : memref<1x192xf32, #tpu.memory_space<vmem>>, vector<1x192xf32>
    %133 = vector.broadcast %132 : vector<1x192xf32> to vector<32x192xf32>
    %134 = arith.addf %131, %133 : vector<32x192xf32>
    %135 = arith.negf %134 : vector<32x192xf32>
    %136 = math.exp %135 : vector<32x192xf32>
    %cst_160 = arith.constant 1.000000e+00 : f32
    %137 = vector.broadcast %cst_160 : f32 to vector<32x192xf32>
    %138 = arith.addf %137, %136 : vector<32x192xf32>
    %139 = arith.divf %137, %138 : vector<32x192xf32>
    %c0_161 = arith.constant 0 : index
    %c0_162 = arith.constant 0 : index
    %140 = vector.load %arg19[%c0_161, %c0_162] : memref<32x192xf32, #tpu.memory_space<vmem>>, vector<32x192xf32>
    tpu.vector_store %arg19[%c0_161, %c0_162], %139 {strides = array<i32>} : memref<32x192xf32, #tpu.memory_space<vmem>>, vector<32x192xf32>,
    return
  }
  func.func @transform_0(%arg0: i32) -> (i32, i32) {
    %c0_i32 = arith.constant 0 : i32
    %c0_i32_0 = arith.constant 0 : i32
    %c0_i32_1 = arith.constant 0 : i32
    return %c0_i32, %c0_i32_0 : i32, i32
  }
  func.func @transform_1(%arg0: i32) -> (i32, i32) {
    %c0_i32 = arith.constant 0 : i32
    %c0_i32_0 = arith.constant 0 : i32
    %c0_i32_1 = arith.constant 0 : i32
    return %c0_i32, %c0_i32_0 : i32, i32
  }
  func.func @transform_2(%arg0: i32) -> (i32, i32) {
    %c0_i32 = arith.constant 0 : i32
    %c0_i32_0 = arith.constant 0 : i32
    %c0_i32_1 = arith.constant 0 : i32
    return %c0_i32, %c0_i32_0 : i32, i32
  }
  func.func @transform_3(%arg0: i32) -> (i32, i32) {
    %c0_i32 = arith.constant 0 : i32
    %c0_i32_0 = arith.constant 0 : i32
    %c0_i32_1 = arith.constant 0 : i32
    return %c0_i32, %c0_i32_0 : i32, i32
  }
  func.func @transform_4(%arg0: i32) -> (i32, i32) {
    %c0_i32 = arith.constant 0 : i32
    %c0_i32_0 = arith.constant 0 : i32
    %c0_i32_1 = arith.constant 0 : i32
    return %c0_i32, %c0_i32_0 : i32, i32
  }
  func.func @transform_5(%arg0: i32) -> (i32, i32) {
    %c0_i32 = arith.constant 0 : i32
    %c0_i32_0 = arith.constant 0 : i32
    %c0_i32_1 = arith.constant 0 : i32
    return %c0_i32, %c0_i32_0 : i32, i32
  }
  func.func @transform_6(%arg0: i32) -> (i32, i32) {
    %c0_i32 = arith.constant 0 : i32
    %c0_i32_0 = arith.constant 0 : i32
    %c0_i32_1 = arith.constant 0 : i32
    return %c0_i32, %c0_i32_0 : i32, i32
  }
  func.func @transform_7(%arg0: i32) -> (i32, i32) {
    %c0_i32 = arith.constant 0 : i32
    %c0_i32_0 = arith.constant 0 : i32
    %c0_i32_1 = arith.constant 0 : i32
    return %c0_i32, %c0_i32_0 : i32, i32
  }
  func.func @transform_8(%arg0: i32) -> (i32, i32) {
    %c0_i32 = arith.constant 0 : i32
    %c0_i32_0 = arith.constant 0 : i32
    %c0_i32_1 = arith.constant 0 : i32
    return %c0_i32, %c0_i32_0 : i32, i32
  }
  func.func @transform_9(%arg0: i32) -> (i32, i32) {
    %c0_i32 = arith.constant 0 : i32
    %c0_i32_0 = arith.constant 0 : i32
    %c0_i32_1 = arith.constant 0 : i32
    return %c0_i32, %c0_i32_0 : i32, i32
  }
  func.func @transform_10(%arg0: i32) -> (i32, i32) {
    %c0_i32 = arith.constant 0 : i32
    %c0_i32_0 = arith.constant 0 : i32
    %c0_i32_1 = arith.constant 0 : i32
    return %c0_i32, %c0_i32_0 : i32, i32
  }
  func.func @transform_11(%arg0: i32) -> (i32, i32) {
    %c0_i32 = arith.constant 0 : i32
    %c0_i32_0 = arith.constant 0 : i32
    %c0_i32_1 = arith.constant 0 : i32
    return %c0_i32, %c0_i32_0 : i32, i32
  }
  func.func @transform_12(%arg0: i32) -> (i32, i32) {
    %c0_i32 = arith.constant 0 : i32
    %c0_i32_0 = arith.constant 0 : i32
    %c0_i32_1 = arith.constant 0 : i32
    return %c0_i32, %c0_i32_0 : i32, i32
  }
  func.func @transform_13(%arg0: i32) -> (i32, i32) {
    %c0_i32 = arith.constant 0 : i32
    %c0_i32_0 = arith.constant 0 : i32
    %c0_i32_1 = arith.constant 0 : i32
    return %c0_i32, %c0_i32_0 : i32, i32
  }
  func.func @transform_14(%arg0: i32) -> (i32, i32) {
    %c0_i32 = arith.constant 0 : i32
    %c0_i32_0 = arith.constant 0 : i32
    %c0_i32_1 = arith.constant 0 : i32
    return %c0_i32, %c0_i32_0 : i32, i32
  }
  func.func @transform_15(%arg0: i32) -> (i32, i32) {
    %c0_i32 = arith.constant 0 : i32
    %c0_i32_0 = arith.constant 0 : i32
    %c0_i32_1 = arith.constant 0 : i32
    return %c0_i32, %c0_i32_0 : i32, i32
  }
  func.func @transform_16(%arg0: i32) -> (i32, i32) {
    %c0_i32 = arith.constant 0 : i32
    %c0_i32_0 = arith.constant 0 : i32
    %c0_i32_1 = arith.constant 0 : i32
    return %c0_i32, %c0_i32_0 : i32, i32
  }
  func.func @transform_17(%arg0: i32) -> (i32, i32) {
    %c0_i32 = arith.constant 0 : i32
    %c0_i32_0 = arith.constant 0 : i32
    %c0_i32_1 = arith.constant 0 : i32
    return %c0_i32, %c0_i32_0 : i32, i32
  }
  func.func @transform_18(%arg0: i32) -> (i32, i32) {
    %c0_i32 = arith.constant 0 : i32
    %c0_i32_0 = arith.constant 0 : i32
    %c0_i32_1 = arith.constant 0 : i32
    return %c0_i32, %c0_i32_0 : i32, i32
  }
  func.func @transform_19(%arg0: i32) -> (i32, i32) {
    %c0_i32 = arith.constant 0 : i32
    %c0_i32_0 = arith.constant 0 : i32
    %c0_i32_1 = arith.constant 0 : i32
    return %c0_i32, %c0_i32_0 : i32, i32
  }
  func.func @transform_20(%arg0: i32) -> (i32, i32) {
    %c0_i32 = arith.constant 0 : i32
    %c0_i32_0 = arith.constant 0 : i32
    %c0_i32_1 = arith.constant 0 : i32
    return %c0_i32, %c0_i32_0 : i32, i32
  }
}

</mosaic_0001>

<llo_original>
// kernel: vae_forward.1
$region0: #{vae_forward.1}
  #allocation0 [shape = 'u32[]', space=smem, size = 0x4, offset = 0x4, fixed_abs, tag = 'smem constant byte address 0x4 - core index']
  #allocation1 [shape = 'u32[144,128]{1,0:T(1,128)}', space=vmem, size = 0x12000, scoped, tag = 'internal scratch']
  #allocation2 [shape = 'f32[2,512]{1,0:T(2,128)}', space=vmem, size = 0x1000, scoped, tag = 'scratch operand']
  #allocation3 [shape = 'f32[32,32]{1,0:T(8,128)}', space=vmem, size = 0x4000, scoped, tag = 'scratch operand']
  %s0 = inlined_call_operand.vmem [shape: f32[32,192], index: 0, kind: input, shape index: {}]
  %s1 = inlined_call_operand.vmem [shape: f32[2,32], index: 1, kind: input, shape index: {}]
  %s2 = inlined_call_operand.vmem [shape: f32[192,128], index: 2, kind: input, shape index: {}]
  %s3 = inlined_call_operand.vmem [shape: f32[1,128], index: 3, kind: input, shape index: {}]
  %s4 = inlined_call_operand.vmem [shape: f32[128,64], index: 4, kind: input, shape index: {}]
  %s5 = inlined_call_operand.vmem [shape: f32[1,64], index: 5, kind: input, shape index: {}]
  %s6 = inlined_call_operand.vmem [shape: f32[64,32], index: 6, kind: input, shape index: {}]
  %s7 = inlined_call_operand.vmem [shape: f32[1,32], index: 7, kind: input, shape index: {}]
  %s8 = inlined_call_operand.vmem [shape: f32[512,64], index: 8, kind: input, shape index: {}]
  %s9 = inlined_call_operand.vmem [shape: f32[1,64], index: 9, kind: input, shape index: {}]
  %s10 = inlined_call_operand.vmem [shape: f32[32,512], index: 10, kind: input, shape index: {}]
  %s11 = inlined_call_operand.vmem [shape: f32[1,512], index: 11, kind: input, shape index: {}]
  %s12 = inlined_call_operand.vmem [shape: f32[32,64], index: 12, kind: input, shape index: {}]
  %s13 = inlined_call_operand.vmem [shape: f32[1,64], index: 13, kind: input, shape index: {}]
  %s14 = inlined_call_operand.vmem [shape: f32[64,128], index: 14, kind: input, shape index: {}]
  %s15 = inlined_call_operand.vmem [shape: f32[1,128], index: 15, kind: input, shape index: {}]
  %s16 = inlined_call_operand.vmem [shape: f32[128,192], index: 16, kind: input, shape index: {}]
  %s17 = inlined_call_operand.vmem [shape: f32[1,192], index: 17, kind: input, shape index: {}]
  %s18 = inlined_call_operand.vmem [shape: f32[32,192], index: 18, kind: output, shape index: {0}]
  %s19 = inlined_call_operand.hbm [shape: f32[2,32], index: 19, kind: output, shape index: {1}]
  %s20 = inlined_call_operand.hbm [shape: f32[2,32], index: 20, kind: output, shape index: {2}]
  %21 = xla_tuple %s18, %s19, %s20
  %s22 = sld [smem:[#allocation0]]
  $region98: #{vae_forward.1} parent=0
    _
  %s24 = ssub.s32 1, %s22
  %s25 = scalar_select 0, %s24, %s22
  $region1: #{vae_forward.1} parent=0
    #allocation4 [shape = 'u8[1024]{0}', space=vmem, size = 0x400, scoped, tag = 'output window, operand 1, single buffered']
    #allocation5 [shape = 's32[1]{0}', space=sflag, size = 0x4, scoped, tag = 'scoped memory for vae_forward.1']
    #allocation6 [shape = 'u8[1024]{0}', space=vmem, size = 0x400, scoped, tag = 'output window, operand 2, single buffered']
    #allocation7 [shape = 's32[1]{0}', space=sflag, size = 0x4, scoped, tag = 'scoped memory for vae_forward.1']
    %26 = vsyncpa [#allocation5], 0
    %27 = vsyncpa [#allocation7], 0
    // Predicated region
    $region2: #{vae_forward.1} parent=1 // pred_check
      _
    $region3: #{vae_forward.1} parent=1 // pred_check_branch
      %29 = sbr.rel (0) target = $region5
    $region4: #{vae_forward.1} parent=1 // pred_region
      _
    $region5: #{vae_forward.1} parent=1 // pred_fallthru
      _
    // Predicated region
    $region6: #{vae_forward.1} parent=1 // pred_check
      _
    $region7: #{vae_forward.1} parent=1 // pred_check_branch
      %31 = sbr.rel (0) target = $region9
    $region8: #{vae_forward.1} parent=1 // pred_region
      _
    $region9: #{vae_forward.1} parent=1 // pred_fallthru
      _
    // Predicated region
    $region10: #{vae_forward.1} parent=1 // pred_check
      _
    $region11: #{vae_forward.1} parent=1 // pred_check_branch
      %33 = sbr.rel (0) target = $region13
    $region12: #{vae_forward.1} parent=1 // pred_region
      _
    $region13: #{vae_forward.1} parent=1 // pred_fallthru
      _
    // Predicated region
    $region14: #{vae_forward.1} parent=1 // pred_check
      _
    $region15: #{vae_forward.1} parent=1 // pred_check_branch
      %35 = sbr.rel (0) target = $region17
    $region16: #{vae_forward.1} parent=1 // pred_region
      _
    $region17: #{vae_forward.1} parent=1 // pred_fallthru
      _
    // Predicated region
    $region18: #{vae_forward.1} parent=1 // pred_check
      _
    $region19: #{vae_forward.1} parent=1 // pred_check_branch
      %37 = sbr.rel (0) target = $region21
    $region20: #{vae_forward.1} parent=1 // pred_region
      _
    $region21: #{vae_forward.1} parent=1 // pred_fallthru
      _
    // Predicated region
    $region22: #{vae_forward.1} parent=1 // pred_check
      _
    $region23: #{vae_forward.1} parent=1 // pred_check_branch
      %39 = sbr.rel (0) target = $region25
    $region24: #{vae_forward.1} parent=1 // pred_region
      _
    $region25: #{vae_forward.1} parent=1 // pred_fallthru
      _
    // Predicated region
    $region26: #{vae_forward.1} parent=1 // pred_check
      _
    $region27: #{vae_forward.1} parent=1 // pred_check_branch
      %41 = sbr.rel (0) target = $region29
    $region28: #{vae_forward.1} parent=1 // pred_region
      _
    $region29: #{vae_forward.1} parent=1 // pred_fallthru
      _
    // Predicated region
    $region30: #{vae_forward.1} parent=1 // pred_check
      _
    $region31: #{vae_forward.1} parent=1 // pred_check_branch
      %43 = sbr.rel (0) target = $region33
    $region32: #{vae_forward.1} parent=1 // pred_region
      _
    $region33: #{vae_forward.1} parent=1 // pred_fallthru
      _
    // Predicated region
    $region34: #{vae_forward.1} parent=1 // pred_check
      _
    $region35: #{vae_forward.1} parent=1 // pred_check_branch
      %45 = sbr.rel (0) target = $region37
    $region36: #{vae_forward.1} parent=1 // pred_region
      _
    $region37: #{vae_forward.1} parent=1 // pred_fallthru
      _
    // Predicated region
    $region38: #{vae_forward.1} parent=1 // pred_check
      _
    $region39: #{vae_forward.1} parent=1 // pred_check_branch
      %47 = sbr.rel (0) target = $region41
    $region40: #{vae_forward.1} parent=1 // pred_region
      _
    $region41: #{vae_forward.1} parent=1 // pred_fallthru
      _
    // Predicated region
    $region42: #{vae_forward.1} parent=1 // pred_check
      _
    $region43: #{vae_forward.1} parent=1 // pred_check_branch
      %49 = sbr.rel (0) target = $region45
    $region44: #{vae_forward.1} parent=1 // pred_region
      _
    $region45: #{vae_forward.1} parent=1 // pred_fallthru
      _
    // Predicated region
    $region46: #{vae_forward.1} parent=1 // pred_check
      _
    $region47: #{vae_forward.1} parent=1 // pred_check_branch
      %51 = sbr.rel (0) target = $region49
    $region48: #{vae_forward.1} parent=1 // pred_region
      _
    $region49: #{vae_forward.1} parent=1 // pred_fallthru
      _
    // Predicated region
    $region50: #{vae_forward.1} parent=1 // pred_check
      _
    $region51: #{vae_forward.1} parent=1 // pred_check_branch
      %53 = sbr.rel (0) target = $region53
    $region52: #{vae_forward.1} parent=1 // pred_region
      _
    $region53: #{vae_forward.1} parent=1 // pred_fallthru
      _
    // Predicated region
    $region54: #{vae_forward.1} parent=1 // pred_check
      _
    $region55: #{vae_forward.1} parent=1 // pred_check_branch
      %55 = sbr.rel (0) target = $region57
    $region56: #{vae_forward.1} parent=1 // pred_region
      _
    $region57: #{vae_forward.1} parent=1 // pred_fallthru
      _
    // Predicated region
    $region58: #{vae_forward.1} parent=1 // pred_check
      _
    $region59: #{vae_forward.1} parent=1 // pred_check_branch
      %57 = sbr.rel (0) target = $region61
    $region60: #{vae_forward.1} parent=1 // pred_region
      _
    $region61: #{vae_forward.1} parent=1 // pred_fallthru
      _
    // Predicated region
    $region62: #{vae_forward.1} parent=1 // pred_check
      _
    $region63: #{vae_forward.1} parent=1 // pred_check_branch
      %59 = sbr.rel (0) target = $region65
    $region64: #{vae_forward.1} parent=1 // pred_region
      _
    $region65: #{vae_forward.1} parent=1 // pred_fallthru
      _
    // Predicated region
    $region66: #{vae_forward.1} parent=1 // pred_check
      _
    $region67: #{vae_forward.1} parent=1 // pred_check_branch
      %61 = sbr.rel (0) target = $region69
    $region68: #{vae_forward.1} parent=1 // pred_region
      _
    $region69: #{vae_forward.1} parent=1 // pred_fallthru
      _
    // Predicated region
    $region70: #{vae_forward.1} parent=1 // pred_check
      _
    $region71: #{vae_forward.1} parent=1 // pred_check_branch
      %63 = sbr.rel (0) target = $region73
    $region72: #{vae_forward.1} parent=1 // pred_region
      _
    $region73: #{vae_forward.1} parent=1 // pred_fallthru
      _
    %v64 = vld [vmem:[%s0] sm:$0xff]
    %v65 = vld [vmem:[%s0 + $0x8] sm:$0xff]
    %v66 = vld [vmem:[%s0 + $0x10] sm:$0xff]
    %v67 = vld [vmem:[%s0 + $0x18] sm:$0xff]
    %v68 = vld [vmem:[%s0 + $0x20] sm:$0xff]
    %v69 = vld [vmem:[%s0 + $0x28] sm:$0xff]
    %v70 = vld [vmem:[%s0 + $0x30] sm:$0xff]
    %v71 = vld [vmem:[%s0 + $0x38] sm:$0xff]
    %v72 = vld [vmem:[%s2] sm:$0xff]
    %v73 = vld [vmem:[%s2 + $0x8] sm:$0xff]
    %v74 = vld [vmem:[%s2 + $0x10] sm:$0xff]
    %v75 = vld [vmem:[%s2 + $0x18] sm:$0xff]
    %v76 = vld [vmem:[%s2 + $0x20] sm:$0xff]
    %v77 = vld [vmem:[%s2 + $0x28] sm:$0xff]
    %v78 = vld [vmem:[%s2 + $0x30] sm:$0xff]
    %v79 = vld [vmem:[%s2 + $0x38] sm:$0xff]
    %v80 = vld [vmem:[%s2 + $0x40] sm:$0xff]
    %v81 = vld [vmem:[%s2 + $0x48] sm:$0xff]
    %v82 = vld [vmem:[%s2 + $0x50] sm:$0xff]
    %v83 = vld [vmem:[%s2 + $0x58] sm:$0xff]
    %v84 = vld [vmem:[%s2 + $0x60] sm:$0xff]
    %v85 = vld [vmem:[%s2 + $0x68] sm:$0xff]
    %v86 = vld [vmem:[%s2 + $0x70] sm:$0xff]
    %v87 = vld [vmem:[%s2 + $0x78] sm:$0xff]
    %v88 = vld [vmem:[%s2 + $0x80] sm:$0xff]
    %v89 = vld [vmem:[%s2 + $0x88] sm:$0xff]
    %v90 = vld [vmem:[%s2 + $0x90] sm:$0xff]
    %v91 = vld [vmem:[%s2 + $0x98] sm:$0xff]
    %v92 = vld [vmem:[%s2 + $0xa0] sm:$0xff]
    %v93 = vld [vmem:[%s2 + $0xa8] sm:$0xff]
    %v94 = vld [vmem:[%s2 + $0xb0] sm:$0xff]
    %v95 = vld [vmem:[%s2 + $0xb8] sm:$0xff]
    %v96 = vld [vmem:[%s3] sm:$0x1]
    %v98 = vlaneseq
    %v99 = vshrl.u32 %v98, 7
    %v100 = vsub.s32 0, %v99
    %v101 = vrot.slane %v96, %v100
    %vm103 = vcmask 523264
    %v105 = vsel %vm103, %v65, 0
    %v108 = vsel %vm103, %v67, 0
    %v111 = vsel %vm103, %v69, 0
    %v114 = vsel %vm103, %v71, 0
    %116 = vmatprep.subr.mxu0 0.0
    %117 = vmatpush1.msra.mxu0 %v87
    %118 = vmatprep.subr.mxu0 0.0
    %119 = vmatpush1.msra.mxu0 %v86
    %120 = vmatprep.subr.mxu0 0.0
    %121 = vmatpush1.msra.mxu0 %v85
    %122 = vmatprep.subr.mxu0 0.0
    %123 = vmatpush1.msra.mxu0 %v84
    %124 = vmatprep.subr.mxu0 0.0
    %125 = vmatpush1.msra.mxu0 %v83
    %126 = vmatprep.subr.mxu0 0.0
    %127 = vmatpush1.msra.mxu0 %v82
    %128 = vmatprep.subr.mxu0 0.0
    %129 = vmatpush1.msra.mxu0 %v81
    %130 = vmatprep.subr.mxu0 0.0
    %131 = vmatpush1.msra.mxu0 %v80
    %132 = vmatprep.subr.mxu0 0.0
    %133 = vmatpush1.msra.mxu0 %v79
    %134 = vmatprep.subr.mxu0 0.0
    %135 = vmatpush1.msra.mxu0 %v78
    %136 = vmatprep.subr.mxu0 0.0
    %137 = vmatpush1.msra.mxu0 %v77
    %138 = vmatprep.subr.mxu0 0.0
    %139 = vmatpush1.msra.mxu0 %v76
    %140 = vmatprep.subr.mxu0 0.0
    %141 = vmatpush1.msra.mxu0 %v75
    %142 = vmatprep.subr.mxu0 0.0
    %143 = vmatpush1.msra.mxu0 %v74
    %144 = vmatprep.subr.mxu0 0.0
    %145 = vmatpush1.msra.mxu0 %v73
    %146 = vmatprep.subr.mxu0 0.0
    %147 = vmatpush1.msra.mxu0 %v72
    %148 = vmatprep.subr.mxu0 0.0
    %149 = vmatpush2.msra.mxu0 0.0
    %150 = vmatprep.subr.mxu0 0.0
    %151 = vmatpush2.msra.mxu0 0.0
    %152 = vmatprep.subr.mxu0 0.0
    %153 = vmatpush2.msra.mxu0 0.0
    %154 = vmatprep.subr.mxu0 0.0
    %155 = vmatpush2.msra.mxu0 0.0
    %156 = vmatprep.subr.mxu0 0.0
    %157 = vmatpush2.msra.mxu0 0.0
    %158 = vmatprep.subr.mxu0 0.0
    %159 = vmatpush2.msra.mxu0 0.0
    %160 = vmatprep.subr.mxu0 0.0
    %161 = vmatpush2.msra.mxu0 0.0
    %162 = vmatprep.subr.mxu0 0.0
    %163 = vmatpush2.msra.mxu0 0.0
    %164 = vmatprep.subr.mxu0 0.0
    %165 = vmatpush2.msra.mxu0 %v95
    %166 = vmatprep.subr.mxu0 0.0
    %167 = vmatpush2.msra.mxu0 %v94
    %168 = vmatprep.subr.mxu0 0.0
    %169 = vmatpush2.msra.mxu0 %v93
    %170 = vmatprep.subr.mxu0 0.0
    %171 = vmatpush2.msra.mxu0 %v92
    %172 = vmatprep.subr.mxu0 0.0
    %173 = vmatpush2.msra.mxu0 %v91
    %174 = vmatprep.subr.mxu0 0.0
    %175 = vmatpush2.msra.mxu0 %v90
    %176 = vmatprep.subr.mxu0 0.0
    %177 = vmatpush2.msra.mxu0 %v89
    %178 = vmatprep.subr.mxu0 0.0
    %179 = vmatpush2.msra.mxu0 %v88
    %180 = vmatprep.mubr.f32.mxu0 %v105
    %181 = vmatmul.mubr.f32.gmra.mxu0 %v64
    %v182 = vpop.f32.mrf.mxu0
    %v183 = vadd.f32 %v101, %v182
    %v184 = vpop.f32.mrf.mxu0
    %185 = vmatprep.mubr.f32.mxu0 %v108
    %186 = vmatmul.mubr.f32.gmra.mxu0 %v66
    %v187 = vpop.f32.mrf.mxu0
    %v188 = vadd.f32 %v101, %v187
    %v189 = vpop.f32.mrf.mxu0
    %190 = vmatprep.mubr.f32.mxu0 %v111
    %191 = vmatmul.mubr.f32.gmra.mxu0 %v68
    %v192 = vpop.f32.mrf.mxu0
    %v193 = vadd.f32 %v101, %v192
    %v194 = vpop.f32.mrf.mxu0
    %195 = vmatprep.mubr.f32.mxu0 %v114
    %196 = vmatmul.mubr.f32.gmra.mxu0 %v70
    %v197 = vpop.f32.mrf.mxu0
    %v198 = vadd.f32 %v101, %v197
    %v199 = vpop.f32.mrf.mxu0
    %200 = vdwg.mxu0
    %v201 = vmax.f32 %v183, 0.0
    %v202 = vmax.f32 %v188, 0.0
    %v203 = vmax.f32 %v193, 0.0
    %v204 = vmax.f32 %v198, 0.0
    %v205 = vld [vmem:[%s4] sm:$0xff]
    %v206 = vld [vmem:[%s4 + $0x8] sm:$0xff]
    %v207 = vld [vmem:[%s4 + $0x10] sm:$0xff]
    %v208 = vld [vmem:[%s4 + $0x18] sm:$0xff]
    %v209 = vld [vmem:[%s4 + $0x20] sm:$0xff]
    %v210 = vld [vmem:[%s4 + $0x28] sm:$0xff]
    %v211 = vld [vmem:[%s4 + $0x30] sm:$0xff]
    %v212 = vld [vmem:[%s4 + $0x38] sm:$0xff]
    %v213 = vld [vmem:[%s4 + $0x40] sm:$0xff]
    %v214 = vld [vmem:[%s4 + $0x48] sm:$0xff]
    %v215 = vld [vmem:[%s4 + $0x50] sm:$0xff]
    %v216 = vld [vmem:[%s4 + $0x58] sm:$0xff]
    %v217 = vld [vmem:[%s4 + $0x60] sm:$0xff]
    %v218 = vld [vmem:[%s4 + $0x68] sm:$0xff]
    %v219 = vld [vmem:[%s4 + $0x70] sm:$0xff]
    %v220 = vld [vmem:[%s4 + $0x78] sm:$0xff]
    %v221 = vld [vmem:[%s5] sm:$0x1]
    %v223 = vlaneseq
    %v224 = vshrl.u32 %v223, 7
    %v225 = vsub.s32 0, %v224
    %v226 = vrot.slane %v221, %v225
    %228 = vmatprep.subr.mxu0 0.0
    %229 = vmatpush1.msra.mxu0 %v220
    %230 = vmatprep.subr.mxu0 0.0
    %231 = vmatpush1.msra.mxu0 %v219
    %232 = vmatprep.subr.mxu0 0.0
    %233 = vmatpush1.msra.mxu0 %v218
    %234 = vmatprep.subr.mxu0 0.0
    %235 = vmatpush1.msra.mxu0 %v217
    %236 = vmatprep.subr.mxu0 0.0
    %237 = vmatpush1.msra.mxu0 %v216
    %238 = vmatprep.subr.mxu0 0.0
    %239 = vmatpush1.msra.mxu0 %v215
    %240 = vmatprep.subr.mxu0 0.0
    %241 = vmatpush1.msra.mxu0 %v214
    %242 = vmatprep.subr.mxu0 0.0
    %243 = vmatpush1.msra.mxu0 %v213
    %244 = vmatprep.subr.mxu0 0.0
    %245 = vmatpush1.msra.mxu0 %v212
    %246 = vmatprep.subr.mxu0 0.0
    %247 = vmatpush1.msra.mxu0 %v211
    %248 = vmatprep.subr.mxu0 0.0
    %249 = vmatpush1.msra.mxu0 %v210
    %250 = vmatprep.subr.mxu0 0.0
    %251 = vmatpush1.msra.mxu0 %v209
    %252 = vmatprep.subr.mxu0 0.0
    %253 = vmatpush1.msra.mxu0 %v208
    %254 = vmatprep.subr.mxu0 0.0
    %255 = vmatpush1.msra.mxu0 %v207
    %256 = vmatprep.subr.mxu0 0.0
    %257 = vmatpush1.msra.mxu0 %v206
    %258 = vmatprep.subr.mxu0 0.0
    %259 = vmatpush1.msra.mxu0 %v205
    %260 = vmatprep.subr.mxu0 0.0
    %261 = vmatpush2.msra.mxu0 0.0
    %262 = vmatprep.subr.mxu0 0.0
    %263 = vmatpush2.msra.mxu0 0.0
    %264 = vmatprep.subr.mxu0 0.0
    %265 = vmatpush2.msra.mxu0 0.0
    %266 = vmatprep.subr.mxu0 0.0
    %267 = vmatpush2.msra.mxu0 0.0
    %268 = vmatprep.subr.mxu0 0.0
    %269 = vmatpush2.msra.mxu0 0.0
    %270 = vmatprep.subr.mxu0 0.0
    %271 = vmatpush2.msra.mxu0 0.0
    %272 = vmatprep.subr.mxu0 0.0
    %273 = vmatpush2.msra.mxu0 0.0
    %274 = vmatprep.subr.mxu0 0.0
    %275 = vmatpush2.msra.mxu0 0.0
    %276 = vmatprep.subr.mxu0 0.0
    %277 = vmatpush2.msra.mxu0 0.0
    %278 = vmatprep.subr.mxu0 0.0
    %279 = vmatpush2.msra.mxu0 0.0
    %280 = vmatprep.subr.mxu0 0.0
    %281 = vmatpush2.msra.mxu0 0.0
    %282 = vmatprep.subr.mxu0 0.0
    %283 = vmatpush2.msra.mxu0 0.0
    %284 = vmatprep.subr.mxu0 0.0
    %285 = vmatpush2.msra.mxu0 0.0
    %286 = vmatprep.subr.mxu0 0.0
    %287 = vmatpush2.msra.mxu0 0.0
    %288 = vmatprep.subr.mxu0 0.0
    %289 = vmatpush2.msra.mxu0 0.0
    %290 = vmatprep.subr.mxu0 0.0
    %291 = vmatpush2.msra.mxu0 0.0
    %292 = vmatprep.mubr.f32.mxu0 0.0
    %293 = vmatmul.mubr.f32.gmra.mxu0 %v201
    %v294 = vpop.f32.mrf.mxu0
    %v295 = vadd.f32 %v226, %v294
    %v296 = vpop.f32.mrf.mxu0
    %297 = vmatprep.mubr.f32.mxu0 0.0
    %298 = vmatmul.mubr.f32.gmra.mxu0 %v202
    %v299 = vpop.f32.mrf.mxu0
    %v300 = vadd.f32 %v226, %v299
    %v301 = vpop.f32.mrf.mxu0
    %302 = vmatprep.mubr.f32.mxu0 0.0
    %303 = vmatmul.mubr.f32.gmra.mxu0 %v203
    %v304 = vpop.f32.mrf.mxu0
    %v305 = vadd.f32 %v226, %v304
    %v306 = vpop.f32.mrf.mxu0
    %307 = vmatprep.mubr.f32.mxu0 0.0
    %308 = vmatmul.mubr.f32.gmra.mxu0 %v204
    %v309 = vpop.f32.mrf.mxu0
    %v310 = vadd.f32 %v226, %v309
    %v311 = vpop.f32.mrf.mxu0
    %312 = vdwg.mxu0
    %v313 = vmax.f32 %v295, 0.0
    %v314 = vmax.f32 %v300, 0.0
    %v315 = vmax.f32 %v305, 0.0
    %v316 = vmax.f32 %v310, 0.0
    %v317 = vld [vmem:[%s6] sm:$0xff]
    %v318 = vld [vmem:[%s6 + $0x8] sm:$0xff]
    %v319 = vld [vmem:[%s6 + $0x10] sm:$0xff]
    %v320 = vld [vmem:[%s6 + $0x18] sm:$0xff]
    %v321 = vld [vmem:[%s6 + $0x20] sm:$0xff]
    %v322 = vld [vmem:[%s6 + $0x28] sm:$0xff]
    %v323 = vld [vmem:[%s6 + $0x30] sm:$0xff]
    %v324 = vld [vmem:[%s6 + $0x38] sm:$0xff]
    %v325 = vld [vmem:[%s7] sm:$0x1]
    %v327 = vlaneseq
    %v328 = vshrl.u32 %v327, 7
    %v329 = vsub.s32 0, %v328
    %v330 = vrot.slane %v325, %v329
    %v333 = vsel %vm103, %v313, 0
    %v336 = vsel %vm103, %v314, 0
    %v339 = vsel %vm103, %v315, 0
    %v342 = vsel %vm103, %v316, 0
    %344 = vmatprep.subr.mxu0 0.0
    %345 = vmatpush1.msra.mxu0 0.0
    %346 = vmatprep.subr.mxu0 0.0
    %347 = vmatpush1.msra.mxu0 0.0
    %348 = vmatprep.subr.mxu0 0.0
    %349 = vmatpush1.msra.mxu0 0.0
    %350 = vmatprep.subr.mxu0 0.0
    %351 = vmatpush1.msra.mxu0 0.0
    %352 = vmatprep.subr.mxu0 0.0
    %353 = vmatpush1.msra.mxu0 0.0
    %354 = vmatprep.subr.mxu0 0.0
    %355 = vmatpush1.msra.mxu0 0.0
    %356 = vmatprep.subr.mxu0 0.0
    %357 = vmatpush1.msra.mxu0 0.0
    %358 = vmatprep.subr.mxu0 0.0
    %359 = vmatpush1.msra.mxu0 0.0
    %360 = vmatprep.subr.mxu0 0.0
    %361 = vmatpush1.msra.mxu0 %v324
    %362 = vmatprep.subr.mxu0 0.0
    %363 = vmatpush1.msra.mxu0 %v323
    %364 = vmatprep.subr.mxu0 0.0
    %365 = vmatpush1.msra.mxu0 %v322
    %366 = vmatprep.subr.mxu0 0.0
    %367 = vmatpush1.msra.mxu0 %v321
    %368 = vmatprep.subr.mxu0 0.0
    %369 = vmatpush1.msra.mxu0 %v320
    %370 = vmatprep.subr.mxu0 0.0
    %371 = vmatpush1.msra.mxu0 %v319
    %372 = vmatprep.subr.mxu0 0.0
    %373 = vmatpush1.msra.mxu0 %v318
    %374 = vmatprep.subr.mxu0 0.0
    %375 = vmatpush1.msra.mxu0 %v317
    %376 = vmatprep.subr.mxu0 0.0
    %377 = vmatpush2.msra.mxu0 0.0
    %378 = vmatprep.subr.mxu0 0.0
    %379 = vmatpush2.msra.mxu0 0.0
    %380 = vmatprep.subr.mxu0 0.0
    %381 = vmatpush2.msra.mxu0 0.0
    %382 = vmatprep.subr.mxu0 0.0
    %383 = vmatpush2.msra.mxu0 0.0
    %384 = vmatprep.subr.mxu0 0.0
    %385 = vmatpush2.msra.mxu0 0.0
    %386 = vmatprep.subr.mxu0 0.0
    %387 = vmatpush2.msra.mxu0 0.0
    %388 = vmatprep.subr.mxu0 0.0
    %389 = vmatpush2.msra.mxu0 0.0
    %390 = vmatprep.subr.mxu0 0.0
    %391 = vmatpush2.msra.mxu0 0.0
    %392 = vmatprep.subr.mxu0 0.0
    %393 = vmatpush2.msra.mxu0 0.0
    %394 = vmatprep.subr.mxu0 0.0
    %395 = vmatpush2.msra.mxu0 0.0
    %396 = vmatprep.subr.mxu0 0.0
    %397 = vmatpush2.msra.mxu0 0.0
    %398 = vmatprep.subr.mxu0 0.0
    %399 = vmatpush2.msra.mxu0 0.0
    %400 = vmatprep.subr.mxu0 0.0
    %401 = vmatpush2.msra.mxu0 0.0
    %402 = vmatprep.subr.mxu0 0.0
    %403 = vmatpush2.msra.mxu0 0.0
    %404 = vmatprep.subr.mxu0 0.0
    %405 = vmatpush2.msra.mxu0 0.0
    %406 = vmatprep.subr.mxu0 0.0
    %407 = vmatpush2.msra.mxu0 0.0
    %408 = vmatprep.mubr.f32.mxu0 0.0
    %409 = vmatmul.mubr.f32.gmra.mxu0 %v333
    %v410 = vpop.f32.mrf.mxu0
    %v411 = vadd.f32 %v330, %v410
    %v412 = vpop.f32.mrf.mxu0
    %413 = vmatprep.mubr.f32.mxu0 0.0
    %414 = vmatmul.mubr.f32.gmra.mxu0 %v336
    %v415 = vpop.f32.mrf.mxu0
    %v416 = vadd.f32 %v330, %v415
    %v417 = vpop.f32.mrf.mxu0
    %418 = vmatprep.mubr.f32.mxu0 0.0
    %419 = vmatmul.mubr.f32.gmra.mxu0 %v339
    %v420 = vpop.f32.mrf.mxu0
    %v421 = vadd.f32 %v330, %v420
    %v422 = vpop.f32.mrf.mxu0
    %423 = vmatprep.mubr.f32.mxu0 0.0
    %424 = vmatmul.mubr.f32.gmra.mxu0 %v342
    %v425 = vpop.f32.mrf.mxu0
    %v426 = vadd.f32 %v330, %v425
    %v427 = vpop.f32.mrf.mxu0
    %428 = vdwg.mxu0
    %v429 = vmax.f32 %v411, 0.0
    %v430 = vmax.f32 %v416, 0.0
    %v431 = vmax.f32 %v421, 0.0
    %v432 = vmax.f32 %v426, 0.0
    %vm433 = vcmask 261120
    %434 = vst.msk [vmem:[#allocation3] sm:$0xff] %vm433, %v429
    %435 = vst.msk [vmem:[#allocation3 + $0x8] sm:$0xff] %vm433, %v430
    %436 = vst.msk [vmem:[#allocation3 + $0x10] sm:$0xff] %vm433, %v431
    %437 = vst.msk [vmem:[#allocation3 + $0x18] sm:$0xff] %vm433, %v432
    %v438 = vld [vmem:[#allocation3] sm:$0x3]
    %vm439 = vcmask 254976
    %440 = vst.msk [vmem:[#allocation2] sm:$0x3] %vm439, %v438
    %v441 = vld [vmem:[#allocation3 + $0x2] sm:$0x3]
    %v444 = vunpack.c.l.s4 1983009808
    %v445 = vunpack.c.0.s8 %v444
    %v446 = vlaneseq
    %v447 = vshrl.u32 %v446, 7
    %v448 = vsub.s32 %v445, %v447
    %v449 = vrot.slane %v441, %v448
    %450 = vrot.lane.b32.xlu0 %v449, 32
    %v451 = vpop.permute.xlu0 %450
    %vm453 = vcmask 517376
    %454 = vst.msk [vmem:[#allocation2] sm:$0x3] %vm453, %v451
    %v455 = vld [vmem:[#allocation3 + $0x4] sm:$0x3]
    %v458 = vunpack.c.l.s4 1983009808
    %v459 = vunpack.c.0.s8 %v458
    %v460 = vlaneseq
    %v461 = vshrl.u32 %v460, 7
    %v462 = vsub.s32 %v459, %v461
    %v463 = vrot.slane %v455, %v462
    %464 = vrot.lane.b32.xlu0 %v463, 64
    %v465 = vpop.permute.xlu0 %464
    %vm467 = vcmask 779776
    %468 = vst.msk [vmem:[#allocation2] sm:$0x3] %vm467, %v465
    %v469 = vld [vmem:[#allocation3 + $0x6] sm:$0x3]
    %v472 = vunpack.c.l.s4 1983009808
    %v473 = vunpack.c.0.s8 %v472
    %v474 = vlaneseq
    %v475 = vshrl.u32 %v474, 7
    %v476 = vsub.s32 %v473, %v475
    %v477 = vrot.slane %v469, %v476
    %478 = vrot.lane.b32.xlu0 %v477, 96
    %v479 = vpop.permute.xlu0 %478
    %vm481 = vcmask 1042176
    %482 = vst.msk [vmem:[#allocation2] sm:$0x3] %vm481, %v479
    %v483 = vld [vmem:[#allocation3 + $0x8] sm:$0x3]
    %484 = vst.msk [vmem:[#allocation2 + $0x2] sm:$0x3] %vm439, %v483
    %v485 = vld [vmem:[#allocation3 + $0xa] sm:$0x3]
    %v488 = vunpack.c.l.s4 1983009808
    %v489 = vunpack.c.0.s8 %v488
    %v490 = vlaneseq
    %v491 = vshrl.u32 %v490, 7
    %v492 = vsub.s32 %v489, %v491
    %v493 = vrot.slane %v485, %v492
    %494 = vrot.lane.b32.xlu0 %v493, 32
    %v495 = vpop.permute.xlu0 %494
    %497 = vst.msk [vmem:[#allocation2 + $0x2] sm:$0x3] %vm453, %v495
    %v498 = vld [vmem:[#allocation3 + $0xc] sm:$0x3]
    %v501 = vunpack.c.l.s4 1983009808
    %v502 = vunpack.c.0.s8 %v501
    %v503 = vlaneseq
    %v504 = vshrl.u32 %v503, 7
    %v505 = vsub.s32 %v502, %v504
    %v506 = vrot.slane %v498, %v505
    %507 = vrot.lane.b32.xlu0 %v506, 64
    %v508 = vpop.permute.xlu0 %507
    %510 = vst.msk [vmem:[#allocation2 + $0x2] sm:$0x3] %vm467, %v508
    %v511 = vld [vmem:[#allocation3 + $0xe] sm:$0x3]
    %v514 = vunpack.c.l.s4 1983009808
    %v515 = vunpack.c.0.s8 %v514
    %v516 = vlaneseq
    %v517 = vshrl.u32 %v516, 7
    %v518 = vsub.s32 %v515, %v517
    %v519 = vrot.slane %v511, %v518
    %520 = vrot.lane.b32.xlu0 %v519, 96
    %v521 = vpop.permute.xlu0 %520
    %523 = vst.msk [vmem:[#allocation2 + $0x2] sm:$0x3] %vm481, %v521
    %v524 = vld [vmem:[#allocation3 + $0x10] sm:$0x3]
    %525 = vst.msk [vmem:[#allocation2 + $0x4] sm:$0x3] %vm439, %v524
    %v526 = vld [vmem:[#allocation3 + $0x12] sm:$0x3]
    %v529 = vunpack.c.l.s4 1983009808
    %v530 = vunpack.c.0.s8 %v529
    %v531 = vlaneseq
    %v532 = vshrl.u32 %v531, 7
    %v533 = vsub.s32 %v530, %v532
    %v534 = vrot.slane %v526, %v533
    %535 = vrot.lane.b32.xlu0 %v534, 32
    %v536 = vpop.permute.xlu0 %535
    %538 = vst.msk [vmem:[#allocation2 + $0x4] sm:$0x3] %vm453, %v536
    %v539 = vld [vmem:[#allocation3 + $0x14] sm:$0x3]
    %v542 = vunpack.c.l.s4 1983009808
    %v543 = vunpack.c.0.s8 %v542
    %v544 = vlaneseq
    %v545 = vshrl.u32 %v544, 7
    %v546 = vsub.s32 %v543, %v545
    %v547 = vrot.slane %v539, %v546
    %548 = vrot.lane.b32.xlu0 %v547, 64
    %v549 = vpop.permute.xlu0 %548
    %551 = vst.msk [vmem:[#allocation2 + $0x4] sm:$0x3] %vm467, %v549
    %v552 = vld [vmem:[#allocation3 + $0x16] sm:$0x3]
    %v555 = vunpack.c.l.s4 1983009808
    %v556 = vunpack.c.0.s8 %v555
    %v557 = vlaneseq
    %v558 = vshrl.u32 %v557, 7
    %v559 = vsub.s32 %v556, %v558
    %v560 = vrot.slane %v552, %v559
    %561 = vrot.lane.b32.xlu0 %v560, 96
    %v562 = vpop.permute.xlu0 %561
    %564 = vst.msk [vmem:[#allocation2 + $0x4] sm:$0x3] %vm481, %v562
    %v565 = vld [vmem:[#allocation3 + $0x18] sm:$0x3]
    %566 = vst.msk [vmem:[#allocation2 + $0x6] sm:$0x3] %vm439, %v565
    %v567 = vld [vmem:[#allocation3 + $0x1a] sm:$0x3]
    %v570 = vunpack.c.l.s4 1983009808
    %v571 = vunpack.c.0.s8 %v570
    %v572 = vlaneseq
    %v573 = vshrl.u32 %v572, 7
    %v574 = vsub.s32 %v571, %v573
    %v575 = vrot.slane %v567, %v574
    %576 = vrot.lane.b32.xlu0 %v575, 32
    %v577 = vpop.permute.xlu0 %576
    %579 = vst.msk [vmem:[#allocation2 + $0x6] sm:$0x3] %vm453, %v577
    %v580 = vld [vmem:[#allocation3 + $0x1c] sm:$0x3]
    %v583 = vunpack.c.l.s4 1983009808
    %v584 = vunpack.c.0.s8 %v583
    %v585 = vlaneseq
    %v586 = vshrl.u32 %v585, 7
    %v587 = vsub.s32 %v584, %v586
    %v588 = vrot.slane %v580, %v587
    %589 = vrot.lane.b32.xlu0 %v588, 64
    %v590 = vpop.permute.xlu0 %589
    %592 = vst.msk [vmem:[#allocation2 + $0x6] sm:$0x3] %vm467, %v590
    %v593 = vld [vmem:[#allocation3 + $0x1e] sm:$0x3]
    %v596 = vunpack.c.l.s4 1983009808
    %v597 = vunpack.c.0.s8 %v596
    %v598 = vlaneseq
    %v599 = vshrl.u32 %v598, 7
    %v600 = vsub.s32 %v597, %v599
    %v601 = vrot.slane %v593, %v600
    %602 = vrot.lane.b32.xlu0 %v601, 96
    %v603 = vpop.permute.xlu0 %602
    %605 = vst.msk [vmem:[#allocation2 + $0x6] sm:$0x3] %vm481, %v603
    %v606 = vld [vmem:[#allocation2] sm:$0xff]
    %v607 = vld [vmem:[%s8] sm:$0xff]
    %v608 = vld [vmem:[%s8 + $0x8] sm:$0xff]
    %v609 = vld [vmem:[%s8 + $0x10] sm:$0xff]
    %v610 = vld [vmem:[%s8 + $0x18] sm:$0xff]
    %v611 = vld [vmem:[%s8 + $0x20] sm:$0xff]
    %v612 = vld [vmem:[%s8 + $0x28] sm:$0xff]
    %v613 = vld [vmem:[%s8 + $0x30] sm:$0xff]
    %v614 = vld [vmem:[%s8 + $0x38] sm:$0xff]
    %v615 = vld [vmem:[%s8 + $0x40] sm:$0xff]
    %v616 = vld [vmem:[%s8 + $0x48] sm:$0xff]
    %v617 = vld [vmem:[%s8 + $0x50] sm:$0xff]
    %v618 = vld [vmem:[%s8 + $0x58] sm:$0xff]
    %v619 = vld [vmem:[%s8 + $0x60] sm:$0xff]
    %v620 = vld [vmem:[%s8 + $0x68] sm:$0xff]
    %v621 = vld [vmem:[%s8 + $0x70] sm:$0xff]
    %v622 = vld [vmem:[%s8 + $0x78] sm:$0xff]
    %v623 = vld [vmem:[%s8 + $0x80] sm:$0xff]
    %v624 = vld [vmem:[%s8 + $0x88] sm:$0xff]
    %v625 = vld [vmem:[%s8 + $0x90] sm:$0xff]
    %v626 = vld [vmem:[%s8 + $0x98] sm:$0xff]
    %v627 = vld [vmem:[%s8 + $0xa0] sm:$0xff]
    %v628 = vld [vmem:[%s8 + $0xa8] sm:$0xff]
    %v629 = vld [vmem:[%s8 + $0xb0] sm:$0xff]
    %v630 = vld [vmem:[%s8 + $0xb8] sm:$0xff]
    %v631 = vld [vmem:[%s8 + $0xc0] sm:$0xff]
    %v632 = vld [vmem:[%s8 + $0xc8] sm:$0xff]
    %v633 = vld [vmem:[%s8 + $0xd0] sm:$0xff]
    %v634 = vld [vmem:[%s8 + $0xd8] sm:$0xff]
    %v635 = vld [vmem:[%s8 + $0xe0] sm:$0xff]
    %v636 = vld [vmem:[%s8 + $0xe8] sm:$0xff]
    %v637 = vld [vmem:[%s8 + $0xf0] sm:$0xff]
    %v638 = vld [vmem:[%s8 + $0xf8] sm:$0xff]
    %v639 = vld [vmem:[%s8 + $0x100] sm:$0xff]
    %v640 = vld [vmem:[%s8 + $0x108] sm:$0xff]
    %v641 = vld [vmem:[%s8 + $0x110] sm:$0xff]
    %v642 = vld [vmem:[%s8 + $0x118] sm:$0xff]
    %v643 = vld [vmem:[%s8 + $0x120] sm:$0xff]
    %v644 = vld [vmem:[%s8 + $0x128] sm:$0xff]
    %v645 = vld [vmem:[%s8 + $0x130] sm:$0xff]
    %v646 = vld [vmem:[%s8 + $0x138] sm:$0xff]
    %v647 = vld [vmem:[%s8 + $0x140] sm:$0xff]
    %v648 = vld [vmem:[%s8 + $0x148] sm:$0xff]
    %v649 = vld [vmem:[%s8 + $0x150] sm:$0xff]
    %v650 = vld [vmem:[%s8 + $0x158] sm:$0xff]
    %v651 = vld [vmem:[%s8 + $0x160] sm:$0xff]
    %v652 = vld [vmem:[%s8 + $0x168] sm:$0xff]
    %v653 = vld [vmem:[%s8 + $0x170] sm:$0xff]
    %v654 = vld [vmem:[%s8 + $0x178] sm:$0xff]
    %v655 = vld [vmem:[%s8 + $0x180] sm:$0xff]
    %v656 = vld [vmem:[%s8 + $0x188] sm:$0xff]
    %v657 = vld [vmem:[%s8 + $0x190] sm:$0xff]
    %v658 = vld [vmem:[%s8 + $0x198] sm:$0xff]
    %v659 = vld [vmem:[%s8 + $0x1a0] sm:$0xff]
    %v660 = vld [vmem:[%s8 + $0x1a8] sm:$0xff]
    %v661 = vld [vmem:[%s8 + $0x1b0] sm:$0xff]
    %v662 = vld [vmem:[%s8 + $0x1b8] sm:$0xff]
    %v663 = vld [vmem:[%s8 + $0x1c0] sm:$0xff]
    %v664 = vld [vmem:[%s8 + $0x1c8] sm:$0xff]
    %v665 = vld [vmem:[%s8 + $0x1d0] sm:$0xff]
    %v666 = vld [vmem:[%s8 + $0x1d8] sm:$0xff]
    %v667 = vld [vmem:[%s8 + $0x1e0] sm:$0xff]
    %v668 = vld [vmem:[%s8 + $0x1e8] sm:$0xff]
    %v669 = vld [vmem:[%s8 + $0x1f0] sm:$0xff]
    %v670 = vld [vmem:[%s8 + $0x1f8] sm:$0xff]
    %v671 = vld [vmem:[%s9] sm:$0x1]
    %v673 = vlaneseq
    %v674 = vshrl.u32 %v673, 7
    %v675 = vsub.s32 0, %v674
    %v676 = vrot.slane %v671, %v675
    %v679 = vcombine.high %v606, %v606
    %v681 = vunpack.c.l.s4 1983009808
    %v682 = vunpack.c.0.s8 %v681
    %v683 = vlaneseq
    %v684 = vshrl.u32 %v683, 7
    %v685 = vsub.s32 %v682, %v684
    %v686 = vrot.slane %v606, %v685
    %v688 = vunpack.c.l.s4 1983009808
    %v689 = vunpack.c.0.s8 %v688
    %v690 = vlaneseq
    %v691 = vshrl.u32 %v690, 7
    %v692 = vsub.s32 %v689, %v691
    %v693 = vrot.slane %v679, %v692
    %v694 = vcombine.high %v686, %v686
    %v695 = vcombine.high %v693, %v693
    %700 = vmatprep.subr.mxu0 0.0
    %701 = vmatpush1.msra.mxu0 %v622
    %702 = vmatprep.subr.mxu0 0.0
    %703 = vmatpush1.msra.mxu0 %v621
    %704 = vmatprep.subr.mxu0 0.0
    %705 = vmatpush1.msra.mxu0 %v620
    %706 = vmatprep.subr.mxu0 0.0
    %707 = vmatpush1.msra.mxu0 %v619
    %708 = vmatprep.subr.mxu0 0.0
    %709 = vmatpush1.msra.mxu0 %v618
    %710 = vmatprep.subr.mxu0 0.0
    %711 = vmatpush1.msra.mxu0 %v617
    %712 = vmatprep.subr.mxu0 0.0
    %713 = vmatpush1.msra.mxu0 %v616
    %714 = vmatprep.subr.mxu0 0.0
    %715 = vmatpush1.msra.mxu0 %v615
    %716 = vmatprep.subr.mxu0 0.0
    %717 = vmatpush1.msra.mxu0 %v614
    %718 = vmatprep.subr.mxu0 0.0
    %719 = vmatpush1.msra.mxu0 %v613
    %720 = vmatprep.subr.mxu0 0.0
    %721 = vmatpush1.msra.mxu0 %v612
    %722 = vmatprep.subr.mxu0 0.0
    %723 = vmatpush1.msra.mxu0 %v611
    %724 = vmatprep.subr.mxu0 0.0
    %725 = vmatpush1.msra.mxu0 %v610
    %726 = vmatprep.subr.mxu0 0.0
    %727 = vmatpush1.msra.mxu0 %v609
    %728 = vmatprep.subr.mxu0 0.0
    %729 = vmatpush1.msra.mxu0 %v608
    %730 = vmatprep.subr.mxu0 0.0
    %731 = vmatpush1.msra.mxu0 %v607
    %732 = vmatprep.subr.mxu0 0.0
    %733 = vmatpush2.msra.mxu0 %v638
    %734 = vmatprep.subr.mxu0 0.0
    %735 = vmatpush2.msra.mxu0 %v637
    %736 = vmatprep.subr.mxu0 0.0
    %737 = vmatpush2.msra.mxu0 %v636
    %738 = vmatprep.subr.mxu0 0.0
    %739 = vmatpush2.msra.mxu0 %v635
    %740 = vmatprep.subr.mxu0 0.0
    %741 = vmatpush2.msra.mxu0 %v634
    %742 = vmatprep.subr.mxu0 0.0
    %743 = vmatpush2.msra.mxu0 %v633
    %744 = vmatprep.subr.mxu0 0.0
    %745 = vmatpush2.msra.mxu0 %v632
    %746 = vmatprep.subr.mxu0 0.0
    %747 = vmatpush2.msra.mxu0 %v631
    %748 = vmatprep.subr.mxu0 0.0
    %749 = vmatpush2.msra.mxu0 %v630
    %750 = vmatprep.subr.mxu0 0.0
    %751 = vmatpush2.msra.mxu0 %v629
    %752 = vmatprep.subr.mxu0 0.0
    %753 = vmatpush2.msra.mxu0 %v628
    %754 = vmatprep.subr.mxu0 0.0
    %755 = vmatpush2.msra.mxu0 %v627
    %756 = vmatprep.subr.mxu0 0.0
    %757 = vmatpush2.msra.mxu0 %v626
    %758 = vmatprep.subr.mxu0 0.0
    %759 = vmatpush2.msra.mxu0 %v625
    %760 = vmatprep.subr.mxu0 0.0
    %761 = vmatpush2.msra.mxu0 %v624
    %762 = vmatprep.subr.mxu0 0.0
    %763 = vmatpush2.msra.mxu0 %v623
    %764 = vmatprep.mubr.f32.mxu0 %v694
    %765 = vmatmul.mubr.f32.gmra.mxu0 %v686
    %v766 = vpop.f32.mrf.mxu0
    %v767 = vadd.f32 %v676, %v766
    %v768 = vpop.f32.mrf.mxu0
    %769 = vdwg.mxu0
    %770 = vmatprep.subr.mxu0 0.0
    %771 = vmatpush1.msra.mxu0 %v654
    %772 = vmatprep.subr.mxu0 0.0
    %773 = vmatpush1.msra.mxu0 %v653
    %774 = vmatprep.subr.mxu0 0.0
    %775 = vmatpush1.msra.mxu0 %v652
    %776 = vmatprep.subr.mxu0 0.0
    %777 = vmatpush1.msra.mxu0 %v651
    %778 = vmatprep.subr.mxu0 0.0
    %779 = vmatpush1.msra.mxu0 %v650
    %780 = vmatprep.subr.mxu0 0.0
    %781 = vmatpush1.msra.mxu0 %v649
    %782 = vmatprep.subr.mxu0 0.0
    %783 = vmatpush1.msra.mxu0 %v648
    %784 = vmatprep.subr.mxu0 0.0
    %785 = vmatpush1.msra.mxu0 %v647
    %786 = vmatprep.subr.mxu0 0.0
    %787 = vmatpush1.msra.mxu0 %v646
    %788 = vmatprep.subr.mxu0 0.0
    %789 = vmatpush1.msra.mxu0 %v645
    %790 = vmatprep.subr.mxu0 0.0
    %791 = vmatpush1.msra.mxu0 %v644
    %792 = vmatprep.subr.mxu0 0.0
    %793 = vmatpush1.msra.mxu0 %v643
    %794 = vmatprep.subr.mxu0 0.0
    %795 = vmatpush1.msra.mxu0 %v642
    %796 = vmatprep.subr.mxu0 0.0
    %797 = vmatpush1.msra.mxu0 %v641
    %798 = vmatprep.subr.mxu0 0.0
    %799 = vmatpush1.msra.mxu0 %v640
    %800 = vmatprep.subr.mxu0 0.0
    %801 = vmatpush1.msra.mxu0 %v639
    %802 = vmatprep.subr.mxu0 0.0
    %803 = vmatpush2.msra.mxu0 %v670
    %804 = vmatprep.subr.mxu0 0.0
    %805 = vmatpush2.msra.mxu0 %v669
    %806 = vmatprep.subr.mxu0 0.0
    %807 = vmatpush2.msra.mxu0 %v668
    %808 = vmatprep.subr.mxu0 0.0
    %809 = vmatpush2.msra.mxu0 %v667
    %810 = vmatprep.subr.mxu0 0.0
    %811 = vmatpush2.msra.mxu0 %v666
    %812 = vmatprep.subr.mxu0 0.0
    %813 = vmatpush2.msra.mxu0 %v665
    %814 = vmatprep.subr.mxu0 0.0
    %815 = vmatpush2.msra.mxu0 %v664
    %816 = vmatprep.subr.mxu0 0.0
    %817 = vmatpush2.msra.mxu0 %v663
    %818 = vmatprep.subr.mxu0 0.0
    %819 = vmatpush2.msra.mxu0 %v662
    %820 = vmatprep.subr.mxu0 0.0
    %821 = vmatpush2.msra.mxu0 %v661
    %822 = vmatprep.subr.mxu0 0.0
    %823 = vmatpush2.msra.mxu0 %v660
    %824 = vmatprep.subr.mxu0 0.0
    %825 = vmatpush2.msra.mxu0 %v659
    %826 = vmatprep.subr.mxu0 0.0
    %827 = vmatpush2.msra.mxu0 %v658
    %828 = vmatprep.subr.mxu0 0.0
    %829 = vmatpush2.msra.mxu0 %v657
    %830 = vmatprep.subr.mxu0 0.0
    %831 = vmatpush2.msra.mxu0 %v656
    %832 = vmatprep.subr.mxu0 0.0
    %833 = vmatpush2.msra.mxu0 %v655
    %834 = vmatprep.mubr.f32.mxu0 %v695
    %835 = vmatmul.mubr.f32.gmra.mxu0 %v693
    %v836 = vpop.f32.mrf.mxu0
    %v837 = vadd.f32 %v767, %v836
    %v838 = vpop.f32.mrf.mxu0
    %839 = vdwg.mxu0
    %840 = vst.msk [vmem:[#allocation4] sm:$0x3] %vm439, %v837
    %842 = vrot.lane.b32.xlu0 %v837, 96
    %v843 = vpop.permute.xlu0 %842
    %845 = vst.msk [vmem:[#allocation6] sm:$0x3] %vm439, %v843
    %v846 = vmul.f32 %v837, 0.5
    %v847 = vmul.f32 %v846, 1.442695
    %v848 = vpow.pop %v847
    %v849 = vld [vmem:[%s1] sm:$0x3]
    %851 = vrot.lane.b32.xlu0 %v848, 96
    %v852 = vpop.permute.xlu0 %851
    %v854 = vmul.f32 %v849, %v852
    %v855 = vadd.f32 %v837, %v854
    %v856 = vld [vmem:[%s10] sm:$0xff]
    %v857 = vld [vmem:[%s10 + $0x8] sm:$0xff]
    %v858 = vld [vmem:[%s10 + $0x10] sm:$0xff]
    %v859 = vld [vmem:[%s10 + $0x18] sm:$0xff]
    %v860 = vld [vmem:[%s10 + $0x20] sm:$0xff]
    %v861 = vld [vmem:[%s10 + $0x28] sm:$0xff]
    %v862 = vld [vmem:[%s10 + $0x30] sm:$0xff]
    %v863 = vld [vmem:[%s10 + $0x38] sm:$0xff]
    %v864 = vld [vmem:[%s10 + $0x40] sm:$0xff]
    %v865 = vld [vmem:[%s10 + $0x48] sm:$0xff]
    %v866 = vld [vmem:[%s10 + $0x50] sm:$0xff]
    %v867 = vld [vmem:[%s10 + $0x58] sm:$0xff]
    %v868 = vld [vmem:[%s10 + $0x60] sm:$0xff]
    %v869 = vld [vmem:[%s10 + $0x68] sm:$0xff]
    %v870 = vld [vmem:[%s10 + $0x70] sm:$0xff]
    %v871 = vld [vmem:[%s10 + $0x78] sm:$0xff]
    %v872 = vld [vmem:[%s11] sm:$0xf]
    %v874 = vlaneseq
    %v875 = vshrl.u32 %v874, 7
    %v876 = vsub.s32 0, %v875
    %v877 = vrot.slane %v872, %v876
    %v878 = vlaneseq
    %v879 = vshrl.u32 %v878, 7
    %v880 = vsub.s32 1, %v879
    %v881 = vrot.slane %v872, %v880
    %v882 = vlaneseq
    %v883 = vshrl.u32 %v882, 7
    %v884 = vsub.s32 2, %v883
    %v885 = vrot.slane %v872, %v884
    %v886 = vlaneseq
    %v887 = vshrl.u32 %v886, 7
    %v888 = vsub.s32 3, %v887
    %v889 = vrot.slane %v872, %v888
    %v895 = vsel %vm433, %v855, 0
    %897 = vmatprep.subr.mxu0 0.0
    %898 = vmatpush1.msra.mxu0 0.0
    %899 = vmatprep.subr.mxu0 0.0
    %900 = vmatpush1.msra.mxu0 0.0
    %901 = vmatprep.subr.mxu0 0.0
    %902 = vmatpush1.msra.mxu0 0.0
    %903 = vmatprep.subr.mxu0 0.0
    %904 = vmatpush1.msra.mxu0 0.0
    %905 = vmatprep.subr.mxu0 0.0
    %906 = vmatpush1.msra.mxu0 0.0
    %907 = vmatprep.subr.mxu0 0.0
    %908 = vmatpush1.msra.mxu0 0.0
    %909 = vmatprep.subr.mxu0 0.0
    %910 = vmatpush1.msra.mxu0 0.0
    %911 = vmatprep.subr.mxu0 0.0
    %912 = vmatpush1.msra.mxu0 0.0
    %913 = vmatprep.subr.mxu0 0.0
    %914 = vmatpush1.msra.mxu0 0.0
    %915 = vmatprep.subr.mxu0 0.0
    %916 = vmatpush1.msra.mxu0 0.0
    %917 = vmatprep.subr.mxu0 0.0
    %918 = vmatpush1.msra.mxu0 0.0
    %919 = vmatprep.subr.mxu0 0.0
    %920 = vmatpush1.msra.mxu0 0.0
    %921 = vmatprep.subr.mxu0 %v869
    %922 = vmatpush1.msra.mxu0 %v868
    %923 = vmatprep.subr.mxu0 %v865
    %924 = vmatpush1.msra.mxu0 %v864
    %925 = vmatprep.subr.mxu0 %v861
    %926 = vmatpush1.msra.mxu0 %v860
    %927 = vmatprep.subr.mxu0 %v857
    %928 = vmatpush1.msra.mxu0 %v856
    %929 = vmatprep.subr.mxu0 0.0
    %930 = vmatpush2.msra.mxu0 0.0
    %931 = vmatprep.subr.mxu0 0.0
    %932 = vmatpush2.msra.mxu0 0.0
    %933 = vmatprep.subr.mxu0 0.0
    %934 = vmatpush2.msra.mxu0 0.0
    %935 = vmatprep.subr.mxu0 0.0
    %936 = vmatpush2.msra.mxu0 0.0
    %937 = vmatprep.subr.mxu0 0.0
    %938 = vmatpush2.msra.mxu0 0.0
    %939 = vmatprep.subr.mxu0 0.0
    %940 = vmatpush2.msra.mxu0 0.0
    %941 = vmatprep.subr.mxu0 0.0
    %942 = vmatpush2.msra.mxu0 0.0
    %943 = vmatprep.subr.mxu0 0.0
    %944 = vmatpush2.msra.mxu0 0.0
    %945 = vmatprep.subr.mxu0 0.0
    %946 = vmatpush2.msra.mxu0 0.0
    %947 = vmatprep.subr.mxu0 0.0
    %948 = vmatpush2.msra.mxu0 0.0
    %949 = vmatprep.subr.mxu0 0.0
    %950 = vmatpush2.msra.mxu0 0.0
    %951 = vmatprep.subr.mxu0 0.0
    %952 = vmatpush2.msra.mxu0 0.0
    %953 = vmatprep.subr.mxu0 0.0
    %954 = vmatpush2.msra.mxu0 0.0
    %955 = vmatprep.subr.mxu0 0.0
    %956 = vmatpush2.msra.mxu0 0.0
    %957 = vmatprep.subr.mxu0 0.0
    %958 = vmatpush2.msra.mxu0 0.0
    %959 = vmatprep.subr.mxu0 0.0
    %960 = vmatpush2.msra.mxu0 0.0
    %961 = vmatprep.mubr.f32.mxu0 0.0
    %962 = vmatmul.mubr.f32.gmra.mxu0 %v895
    %v963 = vpop.f32.mrf.mxu0
    %v964 = vadd.f32 %v877, %v963
    %v965 = vpop.f32.mrf.mxu0
    %v966 = vadd.f32 %v881, %v965
    %967 = vdwg.mxu0
    %968 = vmatprep.subr.mxu0 0.0
    %969 = vmatpush1.msra.mxu0 0.0
    %970 = vmatprep.subr.mxu0 0.0
    %971 = vmatpush1.msra.mxu0 0.0
    %972 = vmatprep.subr.mxu0 0.0
    %973 = vmatpush1.msra.mxu0 0.0
    %974 = vmatprep.subr.mxu0 0.0
    %975 = vmatpush1.msra.mxu0 0.0
    %976 = vmatprep.subr.mxu0 0.0
    %977 = vmatpush1.msra.mxu0 0.0
    %978 = vmatprep.subr.mxu0 0.0
    %979 = vmatpush1.msra.mxu0 0.0
    %980 = vmatprep.subr.mxu0 0.0
    %981 = vmatpush1.msra.mxu0 0.0
    %982 = vmatprep.subr.mxu0 0.0
    %983 = vmatpush1.msra.mxu0 0.0
    %984 = vmatprep.subr.mxu0 0.0
    %985 = vmatpush1.msra.mxu0 0.0
    %986 = vmatprep.subr.mxu0 0.0
    %987 = vmatpush1.msra.mxu0 0.0
    %988 = vmatprep.subr.mxu0 0.0
    %989 = vmatpush1.msra.mxu0 0.0
    %990 = vmatprep.subr.mxu0 0.0
    %991 = vmatpush1.msra.mxu0 0.0
    %992 = vmatprep.subr.mxu0 %v871
    %993 = vmatpush1.msra.mxu0 %v870
    %994 = vmatprep.subr.mxu0 %v867
    %995 = vmatpush1.msra.mxu0 %v866
    %996 = vmatprep.subr.mxu0 %v863
    %997 = vmatpush1.msra.mxu0 %v862
    %998 = vmatprep.subr.mxu0 %v859
    %999 = vmatpush1.msra.mxu0 %v858
    %1000 = vmatprep.subr.mxu0 0.0
    %1001 = vmatpush2.msra.mxu0 0.0
    %1002 = vmatprep.subr.mxu0 0.0
    %1003 = vmatpush2.msra.mxu0 0.0
    %1004 = vmatprep.subr.mxu0 0.0
    %1005 = vmatpush2.msra.mxu0 0.0
    %1006 = vmatprep.subr.mxu0 0.0
    %1007 = vmatpush2.msra.mxu0 0.0
    %1008 = vmatprep.subr.mxu0 0.0
    %1009 = vmatpush2.msra.mxu0 0.0
    %1010 = vmatprep.subr.mxu0 0.0
    %1011 = vmatpush2.msra.mxu0 0.0
    %1012 = vmatprep.subr.mxu0 0.0
    %1013 = vmatpush2.msra.mxu0 0.0
    %1014 = vmatprep.subr.mxu0 0.0
    %1015 = vmatpush2.msra.mxu0 0.0
    %1016 = vmatprep.subr.mxu0 0.0
    %1017 = vmatpush2.msra.mxu0 0.0
    %1018 = vmatprep.subr.mxu0 0.0
    %1019 = vmatpush2.msra.mxu0 0.0
    %1020 = vmatprep.subr.mxu0 0.0
    %1021 = vmatpush2.msra.mxu0 0.0
    %1022 = vmatprep.subr.mxu0 0.0
    %1023 = vmatpush2.msra.mxu0 0.0
    %1024 = vmatprep.subr.mxu0 0.0
    %1025 = vmatpush2.msra.mxu0 0.0
    %1026 = vmatprep.subr.mxu0 0.0
    %1027 = vmatpush2.msra.mxu0 0.0
    %1028 = vmatprep.subr.mxu0 0.0
    %1029 = vmatpush2.msra.mxu0 0.0
    %1030 = vmatprep.subr.mxu0 0.0
    %1031 = vmatpush2.msra.mxu0 0.0
    %1032 = vmatprep.mubr.f32.mxu0 0.0
    %1033 = vmatmul.mubr.f32.gmra.mxu0 %v895
    %v1034 = vpop.f32.mrf.mxu0
    %v1035 = vadd.f32 %v885, %v1034
    %v1036 = vpop.f32.mrf.mxu0
    %v1037 = vadd.f32 %v889, %v1036
    %1038 = vdwg.mxu0
    %v1043 = vcombine.low %v964, %v966
    %v1044 = vcombine.low %v1035, %v1037
    %v1046 = vunpack.c.l.s4 1983009808
    %v1047 = vunpack.c.0.s8 %v1046
    %v1048 = vlaneseq
    %v1049 = vshrl.u32 %v1048, 7
    %v1050 = vsub.s32 %v1047, %v1049
    %v1051 = vrot.slane %v1043, %v1050
    %v1053 = vunpack.c.l.s4 1983009808
    %v1054 = vunpack.c.0.s8 %v1053
    %v1055 = vlaneseq
    %v1056 = vshrl.u32 %v1055, 7
    %v1057 = vsub.s32 %v1054, %v1056
    %v1058 = vrot.slane %v1044, %v1057
    %v1059 = vcombine.low %v1051, %v1058
    %1061 = vst [vmem:[#allocation2] sm:$0xff] %v1059
    %v1062 = vld [vmem:[#allocation2] sm:$0x3]
    %1063 = vst.msk [vmem:[#allocation3] sm:$0x3] %vm439, %v1062
    %v1064 = vld [vmem:[#allocation2] sm:$0x3]
    %v1067 = vunpack.c.l.s4 1983009808
    %v1068 = vunpack.c.0.s8 %v1067
    %v1069 = vlaneseq
    %v1070 = vshrl.u32 %v1069, 7
    %v1071 = vsub.s32 %v1068, %v1070
    %v1072 = vrot.slane %v1064, %v1071
    %1073 = vrot.lane.b32.xlu0 %v1072, 96
    %v1074 = vpop.permute.xlu0 %1073
    %1076 = vst.msk [vmem:[#allocation3 + $0x2] sm:$0x3] %vm439, %v1074
    %v1077 = vld [vmem:[#allocation2] sm:$0x3]
    %v1080 = vunpack.c.l.s4 1983009808
    %v1081 = vunpack.c.0.s8 %v1080
    %v1082 = vlaneseq
    %v1083 = vshrl.u32 %v1082, 7
    %v1084 = vsub.s32 %v1081, %v1083
    %v1085 = vrot.slane %v1077, %v1084
    %1086 = vrot.lane.b32.xlu0 %v1085, 64
    %v1087 = vpop.permute.xlu0 %1086
    %1089 = vst.msk [vmem:[#allocation3 + $0x4] sm:$0x3] %vm439, %v1087
    %v1090 = vld [vmem:[#allocation2] sm:$0x3]
    %v1093 = vunpack.c.l.s4 1983009808
    %v1094 = vunpack.c.0.s8 %v1093
    %v1095 = vlaneseq
    %v1096 = vshrl.u32 %v1095, 7
    %v1097 = vsub.s32 %v1094, %v1096
    %v1098 = vrot.slane %v1090, %v1097
    %1099 = vrot.lane.b32.xlu0 %v1098, 32
    %v1100 = vpop.permute.xlu0 %1099
    %1102 = vst.msk [vmem:[#allocation3 + $0x6] sm:$0x3] %vm439, %v1100
    %v1103 = vld [vmem:[#allocation2 + $0x2] sm:$0x3]
    %1104 = vst.msk [vmem:[#allocation3 + $0x8] sm:$0x3] %vm439, %v1103
    %v1105 = vld [vmem:[#allocation2 + $0x2] sm:$0x3]
    %v1108 = vunpack.c.l.s4 1983009808
    %v1109 = vunpack.c.0.s8 %v1108
    %v1110 = vlaneseq
    %v1111 = vshrl.u32 %v1110, 7
    %v1112 = vsub.s32 %v1109, %v1111
    %v1113 = vrot.slane %v1105, %v1112
    %1114 = vrot.lane.b32.xlu0 %v1113, 96
    %v1115 = vpop.permute.xlu0 %1114
    %1117 = vst.msk [vmem:[#allocation3 + $0xa] sm:$0x3] %vm439, %v1115
    %v1118 = vld [vmem:[#allocation2 + $0x2] sm:$0x3]
    %v1121 = vunpack.c.l.s4 1983009808
    %v1122 = vunpack.c.0.s8 %v1121
    %v1123 = vlaneseq
    %v1124 = vshrl.u32 %v1123, 7
    %v1125 = vsub.s32 %v1122, %v1124
    %v1126 = vrot.slane %v1118, %v1125
    %1127 = vrot.lane.b32.xlu0 %v1126, 64
    %v1128 = vpop.permute.xlu0 %1127
    %1130 = vst.msk [vmem:[#allocation3 + $0xc] sm:$0x3] %vm439, %v1128
    %v1131 = vld [vmem:[#allocation2 + $0x2] sm:$0x3]
    %v1134 = vunpack.c.l.s4 1983009808
    %v1135 = vunpack.c.0.s8 %v1134
    %v1136 = vlaneseq
    %v1137 = vshrl.u32 %v1136, 7
    %v1138 = vsub.s32 %v1135, %v1137
    %v1139 = vrot.slane %v1131, %v1138
    %1140 = vrot.lane.b32.xlu0 %v1139, 32
    %v1141 = vpop.permute.xlu0 %1140
    %1143 = vst.msk [vmem:[#allocation3 + $0xe] sm:$0x3] %vm439, %v1141
    %v1144 = vld [vmem:[#allocation2 + $0x4] sm:$0x3]
    %1145 = vst.msk [vmem:[#allocation3 + $0x10] sm:$0x3] %vm439, %v1144
    %v1146 = vld [vmem:[#allocation2 + $0x4] sm:$0x3]
    %v1149 = vunpack.c.l.s4 1983009808
    %v1150 = vunpack.c.0.s8 %v1149
    %v1151 = vlaneseq
    %v1152 = vshrl.u32 %v1151, 7
    %v1153 = vsub.s32 %v1150, %v1152
    %v1154 = vrot.slane %v1146, %v1153
    %1155 = vrot.lane.b32.xlu0 %v1154, 96
    %v1156 = vpop.permute.xlu0 %1155
    %1158 = vst.msk [vmem:[#allocation3 + $0x12] sm:$0x3] %vm439, %v1156
    %v1159 = vld [vmem:[#allocation2 + $0x4] sm:$0x3]
    %v1162 = vunpack.c.l.s4 1983009808
    %v1163 = vunpack.c.0.s8 %v1162
    %v1164 = vlaneseq
    %v1165 = vshrl.u32 %v1164, 7
    %v1166 = vsub.s32 %v1163, %v1165
    %v1167 = vrot.slane %v1159, %v1166
    %1168 = vrot.lane.b32.xlu0 %v1167, 64
    %v1169 = vpop.permute.xlu0 %1168
    %1171 = vst.msk [vmem:[#allocation3 + $0x14] sm:$0x3] %vm439, %v1169
    %v1172 = vld [vmem:[#allocation2 + $0x4] sm:$0x3]
    %v1175 = vunpack.c.l.s4 1983009808
    %v1176 = vunpack.c.0.s8 %v1175
    %v1177 = vlaneseq
    %v1178 = vshrl.u32 %v1177, 7
    %v1179 = vsub.s32 %v1176, %v1178
    %v1180 = vrot.slane %v1172, %v1179
    %1181 = vrot.lane.b32.xlu0 %v1180, 32
    %v1182 = vpop.permute.xlu0 %1181
    %1184 = vst.msk [vmem:[#allocation3 + $0x16] sm:$0x3] %vm439, %v1182
    %v1185 = vld [vmem:[#allocation2 + $0x6] sm:$0x3]
    %1186 = vst.msk [vmem:[#allocation3 + $0x18] sm:$0x3] %vm439, %v1185
    %v1187 = vld [vmem:[#allocation2 + $0x6] sm:$0x3]
    %v1190 = vunpack.c.l.s4 1983009808
    %v1191 = vunpack.c.0.s8 %v1190
    %v1192 = vlaneseq
    %v1193 = vshrl.u32 %v1192, 7
    %v1194 = vsub.s32 %v1191, %v1193
    %v1195 = vrot.slane %v1187, %v1194
    %1196 = vrot.lane.b32.xlu0 %v1195, 96
    %v1197 = vpop.permute.xlu0 %1196
    %1199 = vst.msk [vmem:[#allocation3 + $0x1a] sm:$0x3] %vm439, %v1197
    %v1200 = vld [vmem:[#allocation2 + $0x6] sm:$0x3]
    %v1203 = vunpack.c.l.s4 1983009808
    %v1204 = vunpack.c.0.s8 %v1203
    %v1205 = vlaneseq
    %v1206 = vshrl.u32 %v1205, 7
    %v1207 = vsub.s32 %v1204, %v1206
    %v1208 = vrot.slane %v1200, %v1207
    %1209 = vrot.lane.b32.xlu0 %v1208, 64
    %v1210 = vpop.permute.xlu0 %1209
    %1212 = vst.msk [vmem:[#allocation3 + $0x1c] sm:$0x3] %vm439, %v1210
    %v1213 = vld [vmem:[#allocation2 + $0x6] sm:$0x3]
    %v1216 = vunpack.c.l.s4 1983009808
    %v1217 = vunpack.c.0.s8 %v1216
    %v1218 = vlaneseq
    %v1219 = vshrl.u32 %v1218, 7
    %v1220 = vsub.s32 %v1217, %v1219
    %v1221 = vrot.slane %v1213, %v1220
    %1222 = vrot.lane.b32.xlu0 %v1221, 32
    %v1223 = vpop.permute.xlu0 %1222
    %1225 = vst.msk [vmem:[#allocation3 + $0x1e] sm:$0x3] %vm439, %v1223
    %v1226 = vld [vmem:[#allocation3] sm:$0xff]
    %v1227 = vld [vmem:[#allocation3 + $0x8] sm:$0xff]
    %v1228 = vld [vmem:[#allocation3 + $0x10] sm:$0xff]
    %v1229 = vld [vmem:[#allocation3 + $0x18] sm:$0xff]
    %v1230 = vld [vmem:[%s12] sm:$0xff]
    %v1231 = vld [vmem:[%s12 + $0x8] sm:$0xff]
    %v1232 = vld [vmem:[%s12 + $0x10] sm:$0xff]
    %v1233 = vld [vmem:[%s12 + $0x18] sm:$0xff]
    %v1234 = vld [vmem:[%s13] sm:$0x1]
    %v1236 = vlaneseq
    %v1237 = vshrl.u32 %v1236, 7
    %v1238 = vsub.s32 0, %v1237
    %v1239 = vrot.slane %v1234, %v1238
    %v1242 = vsel %vm433, %v1226, 0
    %v1245 = vsel %vm433, %v1227, 0
    %v1248 = vsel %vm433, %v1228, 0
    %v1251 = vsel %vm433, %v1229, 0
    %1253 = vmatprep.subr.mxu0 0.0
    %1254 = vmatpush1.msra.mxu0 0.0
    %1255 = vmatprep.subr.mxu0 0.0
    %1256 = vmatpush1.msra.mxu0 0.0
    %1257 = vmatprep.subr.mxu0 0.0
    %1258 = vmatpush1.msra.mxu0 0.0
    %1259 = vmatprep.subr.mxu0 0.0
    %1260 = vmatpush1.msra.mxu0 0.0
    %1261 = vmatprep.subr.mxu0 0.0
    %1262 = vmatpush1.msra.mxu0 0.0
    %1263 = vmatprep.subr.mxu0 0.0
    %1264 = vmatpush1.msra.mxu0 0.0
    %1265 = vmatprep.subr.mxu0 0.0
    %1266 = vmatpush1.msra.mxu0 0.0
    %1267 = vmatprep.subr.mxu0 0.0
    %1268 = vmatpush1.msra.mxu0 0.0
    %1269 = vmatprep.subr.mxu0 0.0
    %1270 = vmatpush1.msra.mxu0 0.0
    %1271 = vmatprep.subr.mxu0 0.0
    %1272 = vmatpush1.msra.mxu0 0.0
    %1273 = vmatprep.subr.mxu0 0.0
    %1274 = vmatpush1.msra.mxu0 0.0
    %1275 = vmatprep.subr.mxu0 0.0
    %1276 = vmatpush1.msra.mxu0 0.0
    %1277 = vmatprep.subr.mxu0 0.0
    %1278 = vmatpush1.msra.mxu0 %v1233
    %1279 = vmatprep.subr.mxu0 0.0
    %1280 = vmatpush1.msra.mxu0 %v1232
    %1281 = vmatprep.subr.mxu0 0.0
    %1282 = vmatpush1.msra.mxu0 %v1231
    %1283 = vmatprep.subr.mxu0 0.0
    %1284 = vmatpush1.msra.mxu0 %v1230
    %1285 = vmatprep.subr.mxu0 0.0
    %1286 = vmatpush2.msra.mxu0 0.0
    %1287 = vmatprep.subr.mxu0 0.0
    %1288 = vmatpush2.msra.mxu0 0.0
    %1289 = vmatprep.subr.mxu0 0.0
    %1290 = vmatpush2.msra.mxu0 0.0
    %1291 = vmatprep.subr.mxu0 0.0
    %1292 = vmatpush2.msra.mxu0 0.0
    %1293 = vmatprep.subr.mxu0 0.0
    %1294 = vmatpush2.msra.mxu0 0.0
    %1295 = vmatprep.subr.mxu0 0.0
    %1296 = vmatpush2.msra.mxu0 0.0
    %1297 = vmatprep.subr.mxu0 0.0
    %1298 = vmatpush2.msra.mxu0 0.0
    %1299 = vmatprep.subr.mxu0 0.0
    %1300 = vmatpush2.msra.mxu0 0.0
    %1301 = vmatprep.subr.mxu0 0.0
    %1302 = vmatpush2.msra.mxu0 0.0
    %1303 = vmatprep.subr.mxu0 0.0
    %1304 = vmatpush2.msra.mxu0 0.0
    %1305 = vmatprep.subr.mxu0 0.0
    %1306 = vmatpush2.msra.mxu0 0.0
    %1307 = vmatprep.subr.mxu0 0.0
    %1308 = vmatpush2.msra.mxu0 0.0
    %1309 = vmatprep.subr.mxu0 0.0
    %1310 = vmatpush2.msra.mxu0 0.0
    %1311 = vmatprep.subr.mxu0 0.0
    %1312 = vmatpush2.msra.mxu0 0.0
    %1313 = vmatprep.subr.mxu0 0.0
    %1314 = vmatpush2.msra.mxu0 0.0
    %1315 = vmatprep.subr.mxu0 0.0
    %1316 = vmatpush2.msra.mxu0 0.0
    %1317 = vmatprep.mubr.f32.mxu0 0.0
    %1318 = vmatmul.mubr.f32.gmra.mxu0 %v1242
    %v1319 = vpop.f32.mrf.mxu0
    %v1320 = vadd.f32 %v1239, %v1319
    %v1321 = vpop.f32.mrf.mxu0
    %1322 = vmatprep.mubr.f32.mxu0 0.0
    %1323 = vmatmul.mubr.f32.gmra.mxu0 %v1245
    %v1324 = vpop.f32.mrf.mxu0
    %v1325 = vadd.f32 %v1239, %v1324
    %v1326 = vpop.f32.mrf.mxu0
    %1327 = vmatprep.mubr.f32.mxu0 0.0
    %1328 = vmatmul.mubr.f32.gmra.mxu0 %v1248
    %v1329 = vpop.f32.mrf.mxu0
    %v1330 = vadd.f32 %v1239, %v1329
    %v1331 = vpop.f32.mrf.mxu0
    %1332 = vmatprep.mubr.f32.mxu0 0.0
    %1333 = vmatmul.mubr.f32.gmra.mxu0 %v1251
    %v1334 = vpop.f32.mrf.mxu0
    %v1335 = vadd.f32 %v1239, %v1334
    %v1336 = vpop.f32.mrf.mxu0
    %1337 = vdwg.mxu0
    %vm1338 = vcmp.gt.f32.partialorder %v1320, 0.0
    %vm1339 = vcmp.gt.f32.partialorder %v1325, 0.0
    %vm1340 = vcmp.gt.f32.partialorder %v1330, 0.0
    %vm1341 = vcmp.gt.f32.partialorder %v1335, 0.0
    %v1342 = vmul.f32 %v1320, 0.2
    %v1343 = vmul.f32 %v1325, 0.2
    %v1344 = vmul.f32 %v1330, 0.2
    %v1345 = vmul.f32 %v1335, 0.2
    %v1346 = vsel %vm1338, %v1320, %v1342
    %v1347 = vsel %vm1339, %v1325, %v1343
    %v1348 = vsel %vm1340, %v1330, %v1344
    %v1349 = vsel %vm1341, %v1335, %v1345
    %v1350 = vld [vmem:[%s14] sm:$0xff]
    %v1351 = vld [vmem:[%s14 + $0x8] sm:$0xff]
    %v1352 = vld [vmem:[%s14 + $0x10] sm:$0xff]
    %v1353 = vld [vmem:[%s14 + $0x18] sm:$0xff]
    %v1354 = vld [vmem:[%s14 + $0x20] sm:$0xff]
    %v1355 = vld [vmem:[%s14 + $0x28] sm:$0xff]
    %v1356 = vld [vmem:[%s14 + $0x30] sm:$0xff]
    %v1357 = vld [vmem:[%s14 + $0x38] sm:$0xff]
    %v1358 = vld [vmem:[%s15] sm:$0x1]
    %v1360 = vlaneseq
    %v1361 = vshrl.u32 %v1360, 7
    %v1362 = vsub.s32 0, %v1361
    %v1363 = vrot.slane %v1358, %v1362
    %v1366 = vsel %vm103, %v1346, 0
    %v1369 = vsel %vm103, %v1347, 0
    %v1372 = vsel %vm103, %v1348, 0
    %v1375 = vsel %vm103, %v1349, 0
    %1377 = vmatprep.subr.mxu0 0.0
    %1378 = vmatpush1.msra.mxu0 0.0
    %1379 = vmatprep.subr.mxu0 0.0
    %1380 = vmatpush1.msra.mxu0 0.0
    %1381 = vmatprep.subr.mxu0 0.0
    %1382 = vmatpush1.msra.mxu0 0.0
    %1383 = vmatprep.subr.mxu0 0.0
    %1384 = vmatpush1.msra.mxu0 0.0
    %1385 = vmatprep.subr.mxu0 0.0
    %1386 = vmatpush1.msra.mxu0 0.0
    %1387 = vmatprep.subr.mxu0 0.0
    %1388 = vmatpush1.msra.mxu0 0.0
    %1389 = vmatprep.subr.mxu0 0.0
    %1390 = vmatpush1.msra.mxu0 0.0
    %1391 = vmatprep.subr.mxu0 0.0
    %1392 = vmatpush1.msra.mxu0 0.0
    %1393 = vmatprep.subr.mxu0 0.0
    %1394 = vmatpush1.msra.mxu0 %v1357
    %1395 = vmatprep.subr.mxu0 0.0
    %1396 = vmatpush1.msra.mxu0 %v1356
    %1397 = vmatprep.subr.mxu0 0.0
    %1398 = vmatpush1.msra.mxu0 %v1355
    %1399 = vmatprep.subr.mxu0 0.0
    %1400 = vmatpush1.msra.mxu0 %v1354
    %1401 = vmatprep.subr.mxu0 0.0
    %1402 = vmatpush1.msra.mxu0 %v1353
    %1403 = vmatprep.subr.mxu0 0.0
    %1404 = vmatpush1.msra.mxu0 %v1352
    %1405 = vmatprep.subr.mxu0 0.0
    %1406 = vmatpush1.msra.mxu0 %v1351
    %1407 = vmatprep.subr.mxu0 0.0
    %1408 = vmatpush1.msra.mxu0 %v1350
    %1409 = vmatprep.subr.mxu0 0.0
    %1410 = vmatpush2.msra.mxu0 0.0
    %1411 = vmatprep.subr.mxu0 0.0
    %1412 = vmatpush2.msra.mxu0 0.0
    %1413 = vmatprep.subr.mxu0 0.0
    %1414 = vmatpush2.msra.mxu0 0.0
    %1415 = vmatprep.subr.mxu0 0.0
    %1416 = vmatpush2.msra.mxu0 0.0
    %1417 = vmatprep.subr.mxu0 0.0
    %1418 = vmatpush2.msra.mxu0 0.0
    %1419 = vmatprep.subr.mxu0 0.0
    %1420 = vmatpush2.msra.mxu0 0.0
    %1421 = vmatprep.subr.mxu0 0.0
    %1422 = vmatpush2.msra.mxu0 0.0
    %1423 = vmatprep.subr.mxu0 0.0
    %1424 = vmatpush2.msra.mxu0 0.0
    %1425 = vmatprep.subr.mxu0 0.0
    %1426 = vmatpush2.msra.mxu0 0.0
    %1427 = vmatprep.subr.mxu0 0.0
    %1428 = vmatpush2.msra.mxu0 0.0
    %1429 = vmatprep.subr.mxu0 0.0
    %1430 = vmatpush2.msra.mxu0 0.0
    %1431 = vmatprep.subr.mxu0 0.0
    %1432 = vmatpush2.msra.mxu0 0.0
    %1433 = vmatprep.subr.mxu0 0.0
    %1434 = vmatpush2.msra.mxu0 0.0
    %1435 = vmatprep.subr.mxu0 0.0
    %1436 = vmatpush2.msra.mxu0 0.0
    %1437 = vmatprep.subr.mxu0 0.0
    %1438 = vmatpush2.msra.mxu0 0.0
    %1439 = vmatprep.subr.mxu0 0.0
    %1440 = vmatpush2.msra.mxu0 0.0
    %1441 = vmatprep.mubr.f32.mxu0 0.0
    %1442 = vmatmul.mubr.f32.gmra.mxu0 %v1366
    %v1443 = vpop.f32.mrf.mxu0
    %v1444 = vadd.f32 %v1363, %v1443
    %v1445 = vpop.f32.mrf.mxu0
    %1446 = vmatprep.mubr.f32.mxu0 0.0
    %1447 = vmatmul.mubr.f32.gmra.mxu0 %v1369
    %v1448 = vpop.f32.mrf.mxu0
    %v1449 = vadd.f32 %v1363, %v1448
    %v1450 = vpop.f32.mrf.mxu0
    %1451 = vmatprep.mubr.f32.mxu0 0.0
    %1452 = vmatmul.mubr.f32.gmra.mxu0 %v1372
    %v1453 = vpop.f32.mrf.mxu0
    %v1454 = vadd.f32 %v1363, %v1453
    %v1455 = vpop.f32.mrf.mxu0
    %1456 = vmatprep.mubr.f32.mxu0 0.0
    %1457 = vmatmul.mubr.f32.gmra.mxu0 %v1375
    %v1458 = vpop.f32.mrf.mxu0
    %v1459 = vadd.f32 %v1363, %v1458
    %v1460 = vpop.f32.mrf.mxu0
    %1461 = vdwg.mxu0
    %vm1462 = vcmp.gt.f32.partialorder %v1444, 0.0
    %vm1463 = vcmp.gt.f32.partialorder %v1449, 0.0
    %vm1464 = vcmp.gt.f32.partialorder %v1454, 0.0
    %vm1465 = vcmp.gt.f32.partialorder %v1459, 0.0
    %v1466 = vmul.f32 %v1444, 0.2
    %v1467 = vmul.f32 %v1449, 0.2
    %v1468 = vmul.f32 %v1454, 0.2
    %v1469 = vmul.f32 %v1459, 0.2
    %v1470 = vsel %vm1462, %v1444, %v1466
    %v1471 = vsel %vm1463, %v1449, %v1467
    %v1472 = vsel %vm1464, %v1454, %v1468
    %v1473 = vsel %vm1465, %v1459, %v1469
    %v1474 = vld [vmem:[%s16] sm:$0xff]
    %v1475 = vld [vmem:[%s16 + $0x8] sm:$0xff]
    %v1476 = vld [vmem:[%s16 + $0x10] sm:$0xff]
    %v1477 = vld [vmem:[%s16 + $0x18] sm:$0xff]
    %v1478 = vld [vmem:[%s16 + $0x20] sm:$0xff]
    %v1479 = vld [vmem:[%s16 + $0x28] sm:$0xff]
    %v1480 = vld [vmem:[%s16 + $0x30] sm:$0xff]
    %v1481 = vld [vmem:[%s16 + $0x38] sm:$0xff]
    %v1482 = vld [vmem:[%s16 + $0x40] sm:$0xff]
    %v1483 = vld [vmem:[%s16 + $0x48] sm:$0xff]
    %v1484 = vld [vmem:[%s16 + $0x50] sm:$0xff]
    %v1485 = vld [vmem:[%s16 + $0x58] sm:$0xff]
    %v1486 = vld [vmem:[%s16 + $0x60] sm:$0xff]
    %v1487 = vld [vmem:[%s16 + $0x68] sm:$0xff]
    %v1488 = vld [vmem:[%s16 + $0x70] sm:$0xff]
    %v1489 = vld [vmem:[%s16 + $0x78] sm:$0xff]
    %v1490 = vld [vmem:[%s16 + $0x80] sm:$0xff]
    %v1491 = vld [vmem:[%s16 + $0x88] sm:$0xff]
    %v1492 = vld [vmem:[%s16 + $0x90] sm:$0xff]
    %v1493 = vld [vmem:[%s16 + $0x98] sm:$0xff]
    %v1494 = vld [vmem:[%s16 + $0xa0] sm:$0xff]
    %v1495 = vld [vmem:[%s16 + $0xa8] sm:$0xff]
    %v1496 = vld [vmem:[%s16 + $0xb0] sm:$0xff]
    %v1497 = vld [vmem:[%s16 + $0xb8] sm:$0xff]
    %v1498 = vld [vmem:[%s16 + $0xc0] sm:$0xff]
    %v1499 = vld [vmem:[%s16 + $0xc8] sm:$0xff]
    %v1500 = vld [vmem:[%s16 + $0xd0] sm:$0xff]
    %v1501 = vld [vmem:[%s16 + $0xd8] sm:$0xff]
    %v1502 = vld [vmem:[%s16 + $0xe0] sm:$0xff]
    %v1503 = vld [vmem:[%s16 + $0xe8] sm:$0xff]
    %v1504 = vld [vmem:[%s16 + $0xf0] sm:$0xff]
    %v1505 = vld [vmem:[%s16 + $0xf8] sm:$0xff]
    %v1506 = vld [vmem:[%s17] sm:$0x3]
    %v1508 = vlaneseq
    %v1509 = vshrl.u32 %v1508, 7
    %v1510 = vsub.s32 0, %v1509
    %v1511 = vrot.slane %v1506, %v1510
    %v1512 = vlaneseq
    %v1513 = vshrl.u32 %v1512, 7
    %v1514 = vsub.s32 1, %v1513
    %v1515 = vrot.slane %v1506, %v1514
    %1518 = vmatprep.subr.mxu0 %v1505
    %1519 = vmatpush1.msra.mxu0 %v1504
    %1520 = vmatprep.subr.mxu0 %v1503
    %1521 = vmatpush1.msra.mxu0 %v1502
    %1522 = vmatprep.subr.mxu0 %v1501
    %1523 = vmatpush1.msra.mxu0 %v1500
    %1524 = vmatprep.subr.mxu0 %v1499
    %1525 = vmatpush1.msra.mxu0 %v1498
    %1526 = vmatprep.subr.mxu0 %v1497
    %1527 = vmatpush1.msra.mxu0 %v1496
    %1528 = vmatprep.subr.mxu0 %v1495
    %1529 = vmatpush1.msra.mxu0 %v1494
    %1530 = vmatprep.subr.mxu0 %v1493
    %1531 = vmatpush1.msra.mxu0 %v1492
    %1532 = vmatprep.subr.mxu0 %v1491
    %1533 = vmatpush1.msra.mxu0 %v1490
    %1534 = vmatprep.subr.mxu0 %v1489
    %1535 = vmatpush1.msra.mxu0 %v1488
    %1536 = vmatprep.subr.mxu0 %v1487
    %1537 = vmatpush1.msra.mxu0 %v1486
    %1538 = vmatprep.subr.mxu0 %v1485
    %1539 = vmatpush1.msra.mxu0 %v1484
    %1540 = vmatprep.subr.mxu0 %v1483
    %1541 = vmatpush1.msra.mxu0 %v1482
    %1542 = vmatprep.subr.mxu0 %v1481
    %1543 = vmatpush1.msra.mxu0 %v1480
    %1544 = vmatprep.subr.mxu0 %v1479
    %1545 = vmatpush1.msra.mxu0 %v1478
    %1546 = vmatprep.subr.mxu0 %v1477
    %1547 = vmatpush1.msra.mxu0 %v1476
    %1548 = vmatprep.subr.mxu0 %v1475
    %1549 = vmatpush1.msra.mxu0 %v1474
    %1550 = vmatprep.subr.mxu0 0.0
    %1551 = vmatpush2.msra.mxu0 0.0
    %1552 = vmatprep.subr.mxu0 0.0
    %1553 = vmatpush2.msra.mxu0 0.0
    %1554 = vmatprep.subr.mxu0 0.0
    %1555 = vmatpush2.msra.mxu0 0.0
    %1556 = vmatprep.subr.mxu0 0.0
    %1557 = vmatpush2.msra.mxu0 0.0
    %1558 = vmatprep.subr.mxu0 0.0
    %1559 = vmatpush2.msra.mxu0 0.0
    %1560 = vmatprep.subr.mxu0 0.0
    %1561 = vmatpush2.msra.mxu0 0.0
    %1562 = vmatprep.subr.mxu0 0.0
    %1563 = vmatpush2.msra.mxu0 0.0
    %1564 = vmatprep.subr.mxu0 0.0
    %1565 = vmatpush2.msra.mxu0 0.0
    %1566 = vmatprep.subr.mxu0 0.0
    %1567 = vmatpush2.msra.mxu0 0.0
    %1568 = vmatprep.subr.mxu0 0.0
    %1569 = vmatpush2.msra.mxu0 0.0
    %1570 = vmatprep.subr.mxu0 0.0
    %1571 = vmatpush2.msra.mxu0 0.0
    %1572 = vmatprep.subr.mxu0 0.0
    %1573 = vmatpush2.msra.mxu0 0.0
    %1574 = vmatprep.subr.mxu0 0.0
    %1575 = vmatpush2.msra.mxu0 0.0
    %1576 = vmatprep.subr.mxu0 0.0
    %1577 = vmatpush2.msra.mxu0 0.0
    %1578 = vmatprep.subr.mxu0 0.0
    %1579 = vmatpush2.msra.mxu0 0.0
    %1580 = vmatprep.subr.mxu0 0.0
    %1581 = vmatpush2.msra.mxu0 0.0
    %1582 = vmatprep.mubr.f32.mxu0 0.0
    %1583 = vmatmul.mubr.f32.gmra.mxu0 %v1470
    %v1584 = vpop.f32.mrf.mxu0
    %v1585 = vadd.f32 %v1511, %v1584
    %v1586 = vpop.f32.mrf.mxu0
    %v1587 = vadd.f32 %v1515, %v1586
    %1588 = vmatprep.mubr.f32.mxu0 0.0
    %1589 = vmatmul.mubr.f32.gmra.mxu0 %v1471
    %v1590 = vpop.f32.mrf.mxu0
    %v1591 = vadd.f32 %v1511, %v1590
    %v1592 = vpop.f32.mrf.mxu0
    %v1593 = vadd.f32 %v1515, %v1592
    %1594 = vmatprep.mubr.f32.mxu0 0.0
    %1595 = vmatmul.mubr.f32.gmra.mxu0 %v1472
    %v1596 = vpop.f32.mrf.mxu0
    %v1597 = vadd.f32 %v1511, %v1596
    %v1598 = vpop.f32.mrf.mxu0
    %v1599 = vadd.f32 %v1515, %v1598
    %1600 = vmatprep.mubr.f32.mxu0 0.0
    %1601 = vmatmul.mubr.f32.gmra.mxu0 %v1473
    %v1602 = vpop.f32.mrf.mxu0
    %v1603 = vadd.f32 %v1511, %v1602
    %v1604 = vpop.f32.mrf.mxu0
    %v1605 = vadd.f32 %v1515, %v1604
    %1606 = vdwg.mxu0
    %v1607 = vxor.u32 %v1585, 2147483648
    %v1608 = vxor.u32 %v1587, 2147483648
    %v1609 = vxor.u32 %v1591, 2147483648
    %v1610 = vxor.u32 %v1593, 2147483648
    %v1611 = vxor.u32 %v1597, 2147483648
    %v1612 = vxor.u32 %v1599, 2147483648
    %v1613 = vxor.u32 %v1603, 2147483648
    %v1614 = vxor.u32 %v1605, 2147483648
    %v1615 = vmul.f32 %v1607, 1.442695
    %v1616 = vpow.pop %v1615
    %v1617 = vmul.f32 %v1608, 1.442695
    %v1618 = vpow.pop %v1617
    %v1619 = vmul.f32 %v1609, 1.442695
    %v1620 = vpow.pop %v1619
    %v1621 = vmul.f32 %v1610, 1.442695
    %v1622 = vpow.pop %v1621
    %v1623 = vmul.f32 %v1611, 1.442695
    %v1624 = vpow.pop %v1623
    %v1625 = vmul.f32 %v1612, 1.442695
    %v1626 = vpow.pop %v1625
    %v1627 = vmul.f32 %v1613, 1.442695
    %v1628 = vpow.pop %v1627
    %v1629 = vmul.f32 %v1614, 1.442695
    %v1630 = vpow.pop %v1629
    %v1631 = vadd.f32 %v1616, 1.0
    %v1632 = vadd.f32 %v1618, 1.0
    %v1633 = vadd.f32 %v1620, 1.0
    %v1634 = vadd.f32 %v1622, 1.0
    %v1635 = vadd.f32 %v1624, 1.0
    %v1636 = vadd.f32 %v1626, 1.0
    %v1637 = vadd.f32 %v1628, 1.0
    %v1638 = vadd.f32 %v1630, 1.0
    %v1639 = vrcp.pop %v1631
    %v1640 = vmul.f32 1.0, %v1639
    %v1641 = vrcp.pop %v1632
    %v1642 = vmul.f32 1.0, %v1641
    %v1643 = vrcp.pop %v1633
    %v1644 = vmul.f32 1.0, %v1643
    %v1645 = vrcp.pop %v1634
    %v1646 = vmul.f32 1.0, %v1645
    %v1647 = vrcp.pop %v1635
    %v1648 = vmul.f32 1.0, %v1647
    %v1649 = vrcp.pop %v1636
    %v1650 = vmul.f32 1.0, %v1649
    %v1651 = vrcp.pop %v1637
    %v1652 = vmul.f32 1.0, %v1651
    %v1653 = vrcp.pop %v1638
    %v1654 = vmul.f32 1.0, %v1653
    %1655 = vst [vmem:[%s18] sm:$0xff] %v1640
    %1656 = vst.msk [vmem:[%s18 + $0x8] sm:$0xff] %vm103, %v1642
    %1657 = vst [vmem:[%s18 + $0x10] sm:$0xff] %v1644
    %1658 = vst.msk [vmem:[%s18 + $0x18] sm:$0xff] %vm103, %v1646
    %1659 = vst [vmem:[%s18 + $0x20] sm:$0xff] %v1648
    %1660 = vst.msk [vmem:[%s18 + $0x28] sm:$0xff] %vm103, %v1650
    %1661 = vst [vmem:[%s18 + $0x30] sm:$0xff] %v1652
    %1662 = vst.msk [vmem:[%s18 + $0x38] sm:$0xff] %vm103, %v1654
    // Predicated region
    $region74: #{vae_forward.1} parent=1 // pred_check
      _
    $region75: #{vae_forward.1} parent=1 // pred_check_branch
      %1664 = sbr.rel (0) target = $region77
    $region76: #{vae_forward.1} parent=1 // pred_region
      _
    $region77: #{vae_forward.1} parent=1 // pred_fallthru
      _
    // Predicated region
    $region78: #{vae_forward.1} parent=1 // pred_check
      _
    $region79: #{vae_forward.1} parent=1 // pred_check_branch
      %1666 = sbr.rel (0) target = $region81
    $region80: #{vae_forward.1} parent=1 // pred_region
      %s1668 = ssub.s32 32, 32
      %1669 = vsyncadd [#allocation5], %s1668
      %s1671 = sshll.u32 [#allocation4], 4
      %s1672 = int_to_ptr.vmem [resolvable:$true] %s1671
      %1674 = dma.vmem_to_hbm [thread:$0]  %s1672, 32, %s19, [#allocation5]
    $region81: #{vae_forward.1} parent=1 // pred_fallthru
      _
    // Predicated region
    $region82: #{vae_forward.1} parent=1 // pred_check
      _
    $region83: #{vae_forward.1} parent=1 // pred_check_branch
      %1676 = sbr.rel (0) target = $region85
    $region84: #{vae_forward.1} parent=1 // pred_region
      %s1678 = ssub.s32 32, 32
      %1679 = vsyncadd [#allocation7], %s1678
      %s1681 = sshll.u32 [#allocation6], 4
      %s1682 = int_to_ptr.vmem [resolvable:$true] %s1681
      %1684 = dma.vmem_to_hbm [thread:$0]  %s1682, 32, %s20, [#allocation7]
    $region85: #{vae_forward.1} parent=1 // pred_fallthru
      _
    // Predicated region
    $region86: #{vae_forward.1} parent=1 // pred_check
      _
    $region87: #{vae_forward.1} parent=1 // pred_check_branch
      %1686 = sbr.rel (0) target = $region89
    $region88: #{vae_forward.1} parent=1 // pred_region
      _
    $region89: #{vae_forward.1} parent=1 // pred_fallthru
      _
    // Predicated region
    $region90: #{vae_forward.1} parent=1 // pred_check
      _
    $region91: #{vae_forward.1} parent=1 // pred_check_branch
      %1688 = sbr.rel (0) target = $region93
    $region92: #{vae_forward.1} parent=1 // pred_region
      %1689 = dma.done [#allocation5], 32
    $region93: #{vae_forward.1} parent=1 // pred_fallthru
      _
    // Predicated region
    $region94: #{vae_forward.1} parent=1 // pred_check
      _
    $region95: #{vae_forward.1} parent=1 // pred_check_branch
      %1691 = sbr.rel (0) target = $region97
    $region96: #{vae_forward.1} parent=1 // pred_region
      %1692 = dma.done [#allocation7], 32
    $region97: #{vae_forward.1} parent=1 // pred_fallthru
      _
    %1693 = vsyncpa [#allocation5], 1
    %1694 = vsyncpa [#allocation7], 1

</llo_original>
